<compile_context>
chip_gen: v7x
topology: tpu7x:2x2x1
jax: 0.10.0
libtpu: 0.0.40
codegen_flags: <defaults>
</compile_context>

<pallas_src>
import jax
import jax.numpy as jnp
from jax.experimental import pallas as pl
from jax.experimental.pallas import tpu as pltpu


def lstm_fc_kernel(ids_ref, emb_ref, h0_ref, c0_ref, wih_ref, whh_ref, b_ref,
                   wfc_ref, bfc_ref,
                   out_ref, hn_ref, cn_ref,
                   seq_scratch, xproj_scratch):
    TB = ids_ref.shape[0]
    L, B, H = h0_ref.shape
    T = TB // B
    V_pad = emb_ref.shape[0]

    # ---- embedding gather as a one-hot matmul: one MXU op, one unmasked store ----
    lane_ids = jax.lax.broadcasted_iota(jnp.int32, (TB, V_pad), 1)
    onehot = (lane_ids == ids_ref[...]).astype(jnp.bfloat16)          # (TB, V_pad)
    seq_scratch[...] = jnp.dot(onehot, emb_ref[...],
                               preferred_element_type=jnp.float32).astype(jnp.bfloat16)

    h = None
    for l in range(L):                                                 # layers (static)
        # ---- hoisted input projection: one GEMM per layer, bias folded in once ----
        x_all = seq_scratch[...]                                       # (TB, H) bf16
        xproj_scratch[...] = (
            jnp.dot(x_all, wih_ref[l], preferred_element_type=jnp.float32)
            + b_ref[l]).astype(jnp.bfloat16)                           # (TB, 4H) bf16

        whh_l = whh_ref[l]                                             # stationary RHS
        last_layer = (l == L - 1)

        def step(t, carry, *, last=last_layer, whh=whh_l):
            h, c = carry
            row = t * B
            gates = (xproj_scratch[pl.ds(row, B), :].astype(jnp.float32)
                     + jnp.dot(h.astype(jnp.bfloat16), whh,
                               preferred_element_type=jnp.float32))    # (B, 4H) f32
            # single full-width sigmoid over the 128-lane gate tile (1 EUP push),
            # tanh(g) recovered via 2*sigmoid(2g)-1 (2x folded into weights/bias)
            sig = jax.nn.sigmoid(gates)
            i_g = sig[:, 0:H]
            f_g = sig[:, H:2 * H]
            g_g = 2.0 * sig[:, 2 * H:3 * H] - 1.0
            o_g = sig[:, 3 * H:4 * H]
            c = f_g * c + i_g * g_g
            h = o_g * jnp.tanh(c)
            if not last:
                seq_scratch[pl.ds(row, B), :] = h.astype(jnp.bfloat16)  # next layer input
            return h, c

        h, c = jax.lax.fori_loop(0, T, step, (h0_ref[l], c0_ref[l]), unroll=True)
        hn_ref[l] = h
        cn_ref[l] = c
        # TODO(synk): nn.LSTM inter-layer dropout is train-time only; inference path skips it.

    # PyTorch applies fc to every timestep and keeps out[:, -1]; equivalent to fc(last h).
    out_ref[...] = (jnp.dot(h.astype(jnp.bfloat16), wfc_ref[...],
                            preferred_element_type=jnp.float32)
                    + bfc_ref[...])


@jax.jit
def rnn_forward(x, hidden, params):
    """Mirrors RNN.forward: returns (out (B, O), (h_n, c_n) each (L, B, H))."""
    emb_table, wih, whh, b, wfc, bfc = params
    h0, c0 = hidden
    B, T = x.shape
    L, _, H = h0.shape
    V, E = emb_table.shape
    O = wfc.shape[1]
    assert E == H, "stacked per-layer W_ih requires embedding_dim == hidden_dim"

    # ---- weight prep (tiny, traced/fused by XLA) ----
    # fold a 2x into the g-gate columns so the kernel needs only one sigmoid per tile;
    # power-of-2 scaling is exact in bf16, so no extra rounding is introduced.
    gate_scale = jnp.ones((4 * H,), jnp.float32).at[2 * H:3 * H].set(2.0)
    wih_p = (wih * gate_scale).astype(jnp.bfloat16)
    whh_p = (whh * gate_scale).astype(jnp.bfloat16)
    b_p = b * gate_scale

    V_pad = ((V + 127) // 128) * 128
    emb_p = jnp.zeros((V_pad, E), jnp.float32).at[:V].set(emb_table).astype(jnp.bfloat16)

    O_pad = ((O + 127) // 128) * 128
    wfc_p = jnp.zeros((H, O_pad), jnp.float32).at[:, :O].set(wfc).astype(jnp.bfloat16)
    bfc_p = jnp.zeros((1, O_pad), jnp.float32).at[:, :O].set(bfc)

    # ids: clamp (one-hot gather is OOB-safe anyway) and lay out t-major so each
    # timestep's gate rows are contiguous sublanes of the projection scratch.
    ids_tm = jnp.clip(x.astype(jnp.int32), 0, V - 1).T.reshape(T * B, 1)

    vmem = pl.BlockSpec(memory_space=pltpu.MemorySpace.VMEM)

    out_pad, hn, cn = pl.pallas_call(
        lstm_fc_kernel,
        out_shape=(
            jax.ShapeDtypeStruct((B, O_pad), jnp.float32),
            jax.ShapeDtypeStruct((L, B, H), jnp.float32),
            jax.ShapeDtypeStruct((L, B, H), jnp.float32),
        ),
        in_specs=[vmem] * 9,
        out_specs=(vmem, vmem, vmem),
        scratch_shapes=[
            pltpu.VMEM((T * B, H), jnp.bfloat16),        # current layer's input sequence
            pltpu.VMEM((T * B, 4 * H), jnp.bfloat16),    # hoisted input projection
        ],
        input_output_aliases={2: 1, 3: 2},               # h0 -> h_n, c0 -> c_n buffers
        compiler_params=pltpu.CompilerParams(vmem_limit_bytes=32 * 1024 * 1024),
    )(ids_tm, emb_p, h0, c0, wih_p, whh_p, b_p, wfc_p, bfc_p)

    return out_pad[:, :O], (hn, cn)


def rnn_forward_ref(x, hidden, params):
    """Pure-JAX reference mirroring the kernel's bf16-operand / f32-accumulate math."""
    emb_table, wih, whh, b, wfc, bfc = params
    h0, c0 = hidden
    L, B, H = h0.shape
    T = x.shape[1]
    emb_bf = emb_table.astype(jnp.bfloat16)
    wih_bf = wih.astype(jnp.bfloat16)
    whh_bf = whh.astype(jnp.bfloat16)
    wfc_bf = wfc.astype(jnp.bfloat16)

    seq = jnp.take(emb_bf, x.astype(jnp.int32), axis=0)          # (B, T, E) bf16
    hs, cs = [], []
    for l in range(L):
        # hoisted input projection with bias, rounded to bf16 (mirrors the kernel)
        xp = (jnp.einsum('bte,eg->btg', seq, wih_bf[l],
                         preferred_element_type=jnp.float32)
              + b[l]).astype(jnp.bfloat16)                       # (B, T, 4H)
        h, c = h0[l], c0[l]
        outs = []
        for t in range(T):
            g = (xp[:, t, :].astype(jnp.float32)
                 + jnp.dot(h.astype(jnp.bfloat16), whh_bf[l],
                           preferred_element_type=jnp.float32))
            i_g = jax.nn.sigmoid(g[:, 0:H])
            f_g = jax.nn.sigmoid(g[:, H:2 * H])
            g_g = jnp.tanh(g[:, 2 * H:3 * H])
            o_g = jax.nn.sigmoid(g[:, 3 * H:4 * H])
            c = f_g * c + i_g * g_g
            h = o_g * jnp.tanh(c)
            outs.append(h)
        seq = jnp.stack(outs, axis=1).astype(jnp.bfloat16)
        hs.append(h)
        cs.append(c)
    out = jnp.dot(h.astype(jnp.bfloat16), wfc_bf,
                  preferred_element_type=jnp.float32) + bfc
    return out, (jnp.stack(hs), jnp.stack(cs))


if __name__ == "__main__":
    # module hyper-parameters (small, consistent with the PyTorch __init__)
    vocab_size, output_size = 50, 10
    embedding_dim = hidden_dim = 32          # E == H so per-layer weights stack uniformly
    n_layers = 2
    B, T = 2, 8

    key = jax.random.PRNGKey(0)
    k = jax.random.split(key, 8)

    emb_table = 0.1 * jax.random.normal(k[0], (vocab_size, embedding_dim), jnp.float32)
    wih = 0.1 * jax.random.normal(k[1], (n_layers, embedding_dim, 4 * hidden_dim), jnp.float32)
    whh = 0.1 * jax.random.normal(k[2], (n_layers, hidden_dim, 4 * hidden_dim), jnp.float32)
    # b = b_ih + b_hh (combined, exactly equivalent)
    b = 0.1 * jax.random.normal(k[3], (n_layers, 1, 4 * hidden_dim), jnp.float32)
    wfc = 0.1 * jax.random.normal(k[4], (hidden_dim, output_size), jnp.float32)
    bfc = 0.1 * jax.random.normal(k[5], (1, output_size), jnp.float32)
    params = (emb_table, wih, whh, b, wfc, bfc)

    x = jax.random.randint(k[6], (B, T), 0, vocab_size, dtype=jnp.int32)
    # init_hidden: zeros of shape (n_layers, batch, hidden_dim)
    hidden = (jnp.zeros((n_layers, B, hidden_dim), jnp.float32),
              jnp.zeros((n_layers, B, hidden_dim), jnp.float32))

    out, (h_n, c_n) = rnn_forward(x, hidden, params)
    jax.block_until_ready((out, h_n, c_n))

    ref_out, (ref_h, ref_c) = rnn_forward_ref(x, hidden, params)
    assert out.shape == (B, output_size)
    assert h_n.shape == (n_layers, B, hidden_dim) and c_n.shape == (n_layers, B, hidden_dim)
    assert jnp.allclose(out, ref_out, atol=5e-3, rtol=5e-3)
    assert jnp.allclose(h_n, ref_h, atol=5e-3, rtol=5e-3)
    assert jnp.allclose(c_n, ref_c, atol=5e-3, rtol=5e-3)

    print("KERNEL_OK")
</pallas_src>

<mosaic_0001>
module attributes {stable_mosaic.version = 11 : i64} {
  func.func @lstm_fc_kernel(%arg0: memref<16x1xi32, #tpu.memory_space<vmem>>, %arg1: memref<128x32xbf16, #tpu.memory_space<vmem>>, %arg2: memref<2x2x32xf32, #tpu.memory_space<vmem>>, %arg3: memref<2x2x32xf32, #tpu.memory_space<vmem>>, %arg4: memref<2x32x128xbf16, #tpu.memory_space<vmem>>, %arg5: memref<2x32x128xbf16, #tpu.memory_space<vmem>>, %arg6: memref<2x1x128xf32, #tpu.memory_space<vmem>>, %arg7: memref<32x128xbf16, #tpu.memory_space<vmem>>, %arg8: memref<1x128xf32, #tpu.memory_space<vmem>>, %arg9: memref<2x128xf32, #tpu.memory_space<vmem>>, %arg10: memref<2x2x32xf32, #tpu.memory_space<vmem>>, %arg11: memref<2x2x32xf32, #tpu.memory_space<vmem>>, %arg12: memref<16x32xbf16, #tpu.memory_space<vmem>>, %arg13: memref<16x128xbf16, #tpu.memory_space<vmem>>) attributes {dimension_semantics = [], scalar_prefetch = 0 : i64, scratch_operands = 2 : i64, tpu.core_type = #tpu.core_type<tc>} {
    %0 = tpu.iota {dimensions = array<i32: 1>} : vector<16x128xi32>
    %c0 = arith.constant 0 : index
    %c0_0 = arith.constant 0 : index
    %1 = vector.load %arg0[%c0, %c0_0] : memref<16x1xi32, #tpu.memory_space<vmem>>, vector<16x1xi32>
    %2 = vector.broadcast %1 : vector<16x1xi32> to vector<16x128xi32>
    %3 = arith.cmpi eq, %0, %2 : vector<16x128xi32>
    %4 = arith.extui %3 : vector<16x128xi1> to vector<16x128xi32>
    %5 = arith.sitofp %4 : vector<16x128xi32> to vector<16x128xf32>
    %6 = arith.truncf %5 : vector<16x128xf32> to vector<16x128xbf16>
    %c0_1 = arith.constant 0 : index
    %c0_2 = arith.constant 0 : index
    %7 = vector.load %arg1[%c0_1, %c0_2] : memref<128x32xbf16, #tpu.memory_space<vmem>>, vector<128x32xbf16>
    %cst = arith.constant dense<0.000000e+00> : vector<16x32xf32>
    %8 = tpu.matmul %6, %7, %cst {dimension_numbers = #tpu.dot_dimension_numbers<[1], [0], [0], [1], [0, 0, 1, 1], [], []>} : vector<16x128xbf16>, vector<128x32xbf16>, vector<16x32xf32> -> vector<16x32xf32>
    %9 = arith.truncf %8 : vector<16x32xf32> to vector<16x32xbf16>
    %c0_3 = arith.constant 0 : index
    %c0_4 = arith.constant 0 : index
    %10 = vector.load %arg12[%c0_3, %c0_4] : memref<16x32xbf16, #tpu.memory_space<vmem>>, vector<16x32xbf16>
    tpu.vector_store %arg12[%c0_3, %c0_4], %9 {strides = array<i32>} : memref<16x32xbf16, #tpu.memory_space<vmem>>, vector<16x32xbf16>,
    %c0_5 = arith.constant 0 : index
    %c0_6 = arith.constant 0 : index
    %11 = vector.load %arg12[%c0_5, %c0_6] : memref<16x32xbf16, #tpu.memory_space<vmem>>, vector<16x32xbf16>
    %c0_7 = arith.constant 0 : index
    %c0_8 = arith.constant 0 : index
    %c0_9 = arith.constant 0 : index
    %12 = vector.load %arg4[%c0_7, %c0_8, %c0_9] : memref<2x32x128xbf16, #tpu.memory_space<vmem>>, vector<1x32x128xbf16>
    %13 = vector.shape_cast %12 : vector<1x32x128xbf16> to vector<32x128xbf16>
    %cst_10 = arith.constant dense<0.000000e+00> : vector<16x128xf32>
    %14 = tpu.matmul %11, %13, %cst_10 {dimension_numbers = #tpu.dot_dimension_numbers<[1], [0], [0], [1], [0, 0, 1, 1], [], []>} : vector<16x32xbf16>, vector<32x128xbf16>, vector<16x128xf32> -> vector<16x128xf32>
    %c0_11 = arith.constant 0 : index
    %c0_12 = arith.constant 0 : index
    %c0_13 = arith.constant 0 : index
    %15 = vector.load %arg6[%c0_11, %c0_12, %c0_13] : memref<2x1x128xf32, #tpu.memory_space<vmem>>, vector<1x1x128xf32>
    %16 = vector.shape_cast %15 : vector<1x1x128xf32> to vector<1x128xf32>
    %17 = vector.broadcast %16 : vector<1x128xf32> to vector<16x128xf32>
    %18 = arith.addf %14, %17 : vector<16x128xf32>
    %19 = arith.truncf %18 : vector<16x128xf32> to vector<16x128xbf16>
    %c0_14 = arith.constant 0 : index
    %c0_15 = arith.constant 0 : index
    %20 = vector.load %arg13[%c0_14, %c0_15] : memref<16x128xbf16, #tpu.memory_space<vmem>>, vector<16x128xbf16>
    tpu.vector_store %arg13[%c0_14, %c0_15], %19 {strides = array<i32>} : memref<16x128xbf16, #tpu.memory_space<vmem>>, vector<16x128xbf16>,
    %c0_16 = arith.constant 0 : index
    %c0_17 = arith.constant 0 : index
    %c0_18 = arith.constant 0 : index
    %21 = vector.load %arg5[%c0_16, %c0_17, %c0_18] : memref<2x32x128xbf16, #tpu.memory_space<vmem>>, vector<1x32x128xbf16>
    %22 = vector.shape_cast %21 : vector<1x32x128xbf16> to vector<32x128xbf16>
    %c0_19 = arith.constant 0 : index
    %c0_20 = arith.constant 0 : index
    %c0_21 = arith.constant 0 : index
    %23 = vector.load %arg2[%c0_19, %c0_20, %c0_21] : memref<2x2x32xf32, #tpu.memory_space<vmem>>, vector<1x2x32xf32>
    %24 = vector.shape_cast %23 : vector<1x2x32xf32> to vector<2x32xf32>
    %c0_22 = arith.constant 0 : index
    %c0_23 = arith.constant 0 : index
    %c0_24 = arith.constant 0 : index
    %25 = vector.load %arg3[%c0_22, %c0_23, %c0_24] : memref<2x2x32xf32, #tpu.memory_space<vmem>>, vector<1x2x32xf32>
    %26 = vector.shape_cast %25 : vector<1x2x32xf32> to vector<2x32xf32>
    %c0_i32 = arith.constant 0 : i32
    %c2_i32 = arith.constant 2 : i32
    %27 = arith.muli %c0_i32, %c2_i32 : i32
    %28 = arith.index_cast %27 : i32 to index
    %c0_25 = arith.constant 0 : index
    %29 = vector.load %arg13[%28, %c0_25] : memref<16x128xbf16, #tpu.memory_space<vmem>>, vector<2x128xbf16>
    %30 = arith.extf %29 : vector<2x128xbf16> to vector<2x128xf32>
    %31 = arith.truncf %24 : vector<2x32xf32> to vector<2x32xbf16>
    %cst_26 = arith.constant dense<0.000000e+00> : vector<2x128xf32>
    %32 = tpu.matmul %31, %22, %cst_26 {dimension_numbers = #tpu.dot_dimension_numbers<[1], [0], [0], [1], [0, 0, 1, 1], [], []>} : vector<2x32xbf16>, vector<32x128xbf16>, vector<2x128xf32> -> vector<2x128xf32>
    %33 = arith.addf %30, %32 : vector<2x128xf32>
    %34 = arith.negf %33 : vector<2x128xf32>
    %35 = math.exp %34 : vector<2x128xf32>
    %cst_27 = arith.constant 1.000000e+00 : f32
    %36 = vector.broadcast %cst_27 : f32 to vector<2x128xf32>
    %37 = arith.addf %36, %35 : vector<2x128xf32>
    %38 = arith.divf %36, %37 : vector<2x128xf32>
    %39 = vector.extract_strided_slice %38 {offsets = [0, 0], sizes = [2, 32], strides = [1, 1]} : vector<2x128xf32> to vector<2x32xf32>
    %40 = vector.extract_strided_slice %38 {offsets = [0, 32], sizes = [2, 32], strides = [1, 1]} : vector<2x128xf32> to vector<2x32xf32>
    %41 = vector.extract_strided_slice %38 {offsets = [0, 64], sizes = [2, 32], strides = [1, 1]} : vector<2x128xf32> to vector<2x32xf32>
    %cst_28 = arith.constant 2.000000e+00 : f32
    %42 = vector.broadcast %cst_28 : f32 to vector<2x32xf32>
    %43 = arith.mulf %42, %41 : vector<2x32xf32>
    %cst_29 = arith.constant 1.000000e+00 : f32
    %44 = vector.broadcast %cst_29 : f32 to vector<2x32xf32>
    %45 = arith.subf %43, %44 : vector<2x32xf32>
    %46 = vector.extract_strided_slice %38 {offsets = [0, 96], sizes = [2, 32], strides = [1, 1]} : vector<2x128xf32> to vector<2x32xf32>
    %47 = arith.mulf %40, %26 : vector<2x32xf32>
    %48 = arith.mulf %39, %45 : vector<2x32xf32>
    %49 = arith.addf %47, %48 : vector<2x32xf32>
    %50 = math.tanh %49 : vector<2x32xf32>
    %51 = arith.mulf %46, %50 : vector<2x32xf32>
    %52 = arith.truncf %51 : vector<2x32xf32> to vector<2x32xbf16>
    %53 = arith.index_cast %27 : i32 to index
    %c0_30 = arith.constant 0 : index
    %54 = vector.load %arg12[%53, %c0_30] : memref<16x32xbf16, #tpu.memory_space<vmem>>, vector<2x32xbf16>
    tpu.vector_store %arg12[%53, %c0_30], %52 {strides = array<i32>} : memref<16x32xbf16, #tpu.memory_space<vmem>>, vector<2x32xbf16>,
    %c1_i32 = arith.constant 1 : i32
    %c2_i32_31 = arith.constant 2 : i32
    %55 = arith.muli %c1_i32, %c2_i32_31 : i32
    %56 = arith.index_cast %55 : i32 to index
    %c0_32 = arith.constant 0 : index
    %57 = vector.load %arg13[%56, %c0_32] : memref<16x128xbf16, #tpu.memory_space<vmem>>, vector<2x128xbf16>
    %58 = arith.extf %57 : vector<2x128xbf16> to vector<2x128xf32>
    %59 = arith.truncf %51 : vector<2x32xf32> to vector<2x32xbf16>
    %cst_33 = arith.constant dense<0.000000e+00> : vector<2x128xf32>
    %60 = tpu.matmul %59, %22, %cst_33 {dimension_numbers = #tpu.dot_dimension_numbers<[1], [0], [0], [1], [0, 0, 1, 1], [], []>} : vector<2x32xbf16>, vector<32x128xbf16>, vector<2x128xf32> -> vector<2x128xf32>
    %61 = arith.addf %58, %60 : vector<2x128xf32>
    %62 = arith.negf %61 : vector<2x128xf32>
    %63 = math.exp %62 : vector<2x128xf32>
    %cst_34 = arith.constant 1.000000e+00 : f32
    %64 = vector.broadcast %cst_34 : f32 to vector<2x128xf32>
    %65 = arith.addf %64, %63 : vector<2x128xf32>
    %66 = arith.divf %64, %65 : vector<2x128xf32>
    %67 = vector.extract_strided_slice %66 {offsets = [0, 0], sizes = [2, 32], strides = [1, 1]} : vector<2x128xf32> to vector<2x32xf32>
    %68 = vector.extract_strided_slice %66 {offsets = [0, 32], sizes = [2, 32], strides = [1, 1]} : vector<2x128xf32> to vector<2x32xf32>
    %69 = vector.extract_strided_slice %66 {offsets = [0, 64], sizes = [2, 32], strides = [1, 1]} : vector<2x128xf32> to vector<2x32xf32>
    %cst_35 = arith.constant 2.000000e+00 : f32
    %70 = vector.broadcast %cst_35 : f32 to vector<2x32xf32>
    %71 = arith.mulf %70, %69 : vector<2x32xf32>
    %cst_36 = arith.constant 1.000000e+00 : f32
    %72 = vector.broadcast %cst_36 : f32 to vector<2x32xf32>
    %73 = arith.subf %71, %72 : vector<2x32xf32>
    %74 = vector.extract_strided_slice %66 {offsets = [0, 96], sizes = [2, 32], strides = [1, 1]} : vector<2x128xf32> to vector<2x32xf32>
    %75 = arith.mulf %68, %49 : vector<2x32xf32>
    %76 = arith.mulf %67, %73 : vector<2x32xf32>
    %77 = arith.addf %75, %76 : vector<2x32xf32>
    %78 = math.tanh %77 : vector<2x32xf32>
    %79 = arith.mulf %74, %78 : vector<2x32xf32>
    %80 = arith.truncf %79 : vector<2x32xf32> to vector<2x32xbf16>
    %81 = arith.index_cast %55 : i32 to index
    %c0_37 = arith.constant 0 : index
    %82 = vector.load %arg12[%81, %c0_37] : memref<16x32xbf16, #tpu.memory_space<vmem>>, vector<2x32xbf16>
    tpu.vector_store %arg12[%81, %c0_37], %80 {strides = array<i32>} : memref<16x32xbf16, #tpu.memory_space<vmem>>, vector<2x32xbf16>,
    %c2_i32_38 = arith.constant 2 : i32
    %c2_i32_39 = arith.constant 2 : i32
    %83 = arith.muli %c2_i32_38, %c2_i32_39 : i32
    %84 = arith.index_cast %83 : i32 to index
    %c0_40 = arith.constant 0 : index
    %85 = vector.load %arg13[%84, %c0_40] : memref<16x128xbf16, #tpu.memory_space<vmem>>, vector<2x128xbf16>
    %86 = arith.extf %85 : vector<2x128xbf16> to vector<2x128xf32>
    %87 = arith.truncf %79 : vector<2x32xf32> to vector<2x32xbf16>
    %cst_41 = arith.constant dense<0.000000e+00> : vector<2x128xf32>
    %88 = tpu.matmul %87, %22, %cst_41 {dimension_numbers = #tpu.dot_dimension_numbers<[1], [0], [0], [1], [0, 0, 1, 1], [], []>} : vector<2x32xbf16>, vector<32x128xbf16>, vector<2x128xf32> -> vector<2x128xf32>
    %89 = arith.addf %86, %88 : vector<2x128xf32>
    %90 = arith.negf %89 : vector<2x128xf32>
    %91 = math.exp %90 : vector<2x128xf32>
    %cst_42 = arith.constant 1.000000e+00 : f32
    %92 = vector.broadcast %cst_42 : f32 to vector<2x128xf32>
    %93 = arith.addf %92, %91 : vector<2x128xf32>
    %94 = arith.divf %92, %93 : vector<2x128xf32>
    %95 = vector.extract_strided_slice %94 {offsets = [0, 0], sizes = [2, 32], strides = [1, 1]} : vector<2x128xf32> to vector<2x32xf32>
    %96 = vector.extract_strided_slice %94 {offsets = [0, 32], sizes = [2, 32], strides = [1, 1]} : vector<2x128xf32> to vector<2x32xf32>
    %97 = vector.extract_strided_slice %94 {offsets = [0, 64], sizes = [2, 32], strides = [1, 1]} : vector<2x128xf32> to vector<2x32xf32>
    %cst_43 = arith.constant 2.000000e+00 : f32
    %98 = vector.broadcast %cst_43 : f32 to vector<2x32xf32>
    %99 = arith.mulf %98, %97 : vector<2x32xf32>
    %cst_44 = arith.constant 1.000000e+00 : f32
    %100 = vector.broadcast %cst_44 : f32 to vector<2x32xf32>
    %101 = arith.subf %99, %100 : vector<2x32xf32>
    %102 = vector.extract_strided_slice %94 {offsets = [0, 96], sizes = [2, 32], strides = [1, 1]} : vector<2x128xf32> to vector<2x32xf32>
    %103 = arith.mulf %96, %77 : vector<2x32xf32>
    %104 = arith.mulf %95, %101 : vector<2x32xf32>
    %105 = arith.addf %103, %104 : vector<2x32xf32>
    %106 = math.tanh %105 : vector<2x32xf32>
    %107 = arith.mulf %102, %106 : vector<2x32xf32>
    %108 = arith.truncf %107 : vector<2x32xf32> to vector<2x32xbf16>
    %109 = arith.index_cast %83 : i32 to index
    %c0_45 = arith.constant 0 : index
    %110 = vector.load %arg12[%109, %c0_45] : memref<16x32xbf16, #tpu.memory_space<vmem>>, vector<2x32xbf16>
    tpu.vector_store %arg12[%109, %c0_45], %108 {strides = array<i32>} : memref<16x32xbf16, #tpu.memory_space<vmem>>, vector<2x32xbf16>,
    %c3_i32 = arith.constant 3 : i32
    %c2_i32_46 = arith.constant 2 : i32
    %111 = arith.muli %c3_i32, %c2_i32_46 : i32
    %112 = arith.index_cast %111 : i32 to index
    %c0_47 = arith.constant 0 : index
    %113 = vector.load %arg13[%112, %c0_47] : memref<16x128xbf16, #tpu.memory_space<vmem>>, vector<2x128xbf16>
    %114 = arith.extf %113 : vector<2x128xbf16> to vector<2x128xf32>
    %115 = arith.truncf %107 : vector<2x32xf32> to vector<2x32xbf16>
    %cst_48 = arith.constant dense<0.000000e+00> : vector<2x128xf32>
    %116 = tpu.matmul %115, %22, %cst_48 {dimension_numbers = #tpu.dot_dimension_numbers<[1], [0], [0], [1], [0, 0, 1, 1], [], []>} : vector<2x32xbf16>, vector<32x128xbf16>, vector<2x128xf32> -> vector<2x128xf32>
    %117 = arith.addf %114, %116 : vector<2x128xf32>
    %118 = arith.negf %117 : vector<2x128xf32>
    %119 = math.exp %118 : vector<2x128xf32>
    %cst_49 = arith.constant 1.000000e+00 : f32
    %120 = vector.broadcast %cst_49 : f32 to vector<2x128xf32>
    %121 = arith.addf %120, %119 : vector<2x128xf32>
    %122 = arith.divf %120, %121 : vector<2x128xf32>
    %123 = vector.extract_strided_slice %122 {offsets = [0, 0], sizes = [2, 32], strides = [1, 1]} : vector<2x128xf32> to vector<2x32xf32>
    %124 = vector.extract_strided_slice %122 {offsets = [0, 32], sizes = [2, 32], strides = [1, 1]} : vector<2x128xf32> to vector<2x32xf32>
    %125 = vector.extract_strided_slice %122 {offsets = [0, 64], sizes = [2, 32], strides = [1, 1]} : vector<2x128xf32> to vector<2x32xf32>
    %cst_50 = arith.constant 2.000000e+00 : f32
    %126 = vector.broadcast %cst_50 : f32 to vector<2x32xf32>
    %127 = arith.mulf %126, %125 : vector<2x32xf32>
    %cst_51 = arith.constant 1.000000e+00 : f32
    %128 = vector.broadcast %cst_51 : f32 to vector<2x32xf32>
    %129 = arith.subf %127, %128 : vector<2x32xf32>
    %130 = vector.extract_strided_slice %122 {offsets = [0, 96], sizes = [2, 32], strides = [1, 1]} : vector<2x128xf32> to vector<2x32xf32>
    %131 = arith.mulf %124, %105 : vector<2x32xf32>
    %132 = arith.mulf %123, %129 : vector<2x32xf32>
    %133 = arith.addf %131, %132 : vector<2x32xf32>
    %134 = math.tanh %133 : vector<2x32xf32>
    %135 = arith.mulf %130, %134 : vector<2x32xf32>
    %136 = arith.truncf %135 : vector<2x32xf32> to vector<2x32xbf16>
    %137 = arith.index_cast %111 : i32 to index
    %c0_52 = arith.constant 0 : index
    %138 = vector.load %arg12[%137, %c0_52] : memref<16x32xbf16, #tpu.memory_space<vmem>>, vector<2x32xbf16>
    tpu.vector_store %arg12[%137, %c0_52], %136 {strides = array<i32>} : memref<16x32xbf16, #tpu.memory_space<vmem>>, vector<2x32xbf16>,
    %c4_i32 = arith.constant 4 : i32
    %c2_i32_53 = arith.constant 2 : i32
    %139 = arith.muli %c4_i32, %c2_i32_53 : i32
    %140 = arith.index_cast %139 : i32 to index
    %c0_54 = arith.constant 0 : index
    %141 = vector.load %arg13[%140, %c0_54] : memref<16x128xbf16, #tpu.memory_space<vmem>>, vector<2x128xbf16>
    %142 = arith.extf %141 : vector<2x128xbf16> to vector<2x128xf32>
    %143 = arith.truncf %135 : vector<2x32xf32> to vector<2x32xbf16>
    %cst_55 = arith.constant dense<0.000000e+00> : vector<2x128xf32>
    %144 = tpu.matmul %143, %22, %cst_55 {dimension_numbers = #tpu.dot_dimension_numbers<[1], [0], [0], [1], [0, 0, 1, 1], [], []>} : vector<2x32xbf16>, vector<32x128xbf16>, vector<2x128xf32> -> vector<2x128xf32>
    %145 = arith.addf %142, %144 : vector<2x128xf32>
    %146 = arith.negf %145 : vector<2x128xf32>
    %147 = math.exp %146 : vector<2x128xf32>
    %cst_56 = arith.constant 1.000000e+00 : f32
    %148 = vector.broadcast %cst_56 : f32 to vector<2x128xf32>
    %149 = arith.addf %148, %147 : vector<2x128xf32>
    %150 = arith.divf %148, %149 : vector<2x128xf32>
    %151 = vector.extract_strided_slice %150 {offsets = [0, 0], sizes = [2, 32], strides = [1, 1]} : vector<2x128xf32> to vector<2x32xf32>
    %152 = vector.extract_strided_slice %150 {offsets = [0, 32], sizes = [2, 32], strides = [1, 1]} : vector<2x128xf32> to vector<2x32xf32>
    %153 = vector.extract_strided_slice %150 {offsets = [0, 64], sizes = [2, 32], strides = [1, 1]} : vector<2x128xf32> to vector<2x32xf32>
    %cst_57 = arith.constant 2.000000e+00 : f32
    %154 = vector.broadcast %cst_57 : f32 to vector<2x32xf32>
    %155 = arith.mulf %154, %153 : vector<2x32xf32>
    %cst_58 = arith.constant 1.000000e+00 : f32
    %156 = vector.broadcast %cst_58 : f32 to vector<2x32xf32>
    %157 = arith.subf %155, %156 : vector<2x32xf32>
    %158 = vector.extract_strided_slice %150 {offsets = [0, 96], sizes = [2, 32], strides = [1, 1]} : vector<2x128xf32> to vector<2x32xf32>
    %159 = arith.mulf %152, %133 : vector<2x32xf32>
    %160 = arith.mulf %151, %157 : vector<2x32xf32>
    %161 = arith.addf %159, %160 : vector<2x32xf32>
    %162 = math.tanh %161 : vector<2x32xf32>
    %163 = arith.mulf %158, %162 : vector<2x32xf32>
    %164 = arith.truncf %163 : vector<2x32xf32> to vector<2x32xbf16>
    %165 = arith.index_cast %139 : i32 to index
    %c0_59 = arith.constant 0 : index
    %166 = vector.load %arg12[%165, %c0_59] : memref<16x32xbf16, #tpu.memory_space<vmem>>, vector<2x32xbf16>
    tpu.vector_store %arg12[%165, %c0_59], %164 {strides = array<i32>} : memref<16x32xbf16, #tpu.memory_space<vmem>>, vector<2x32xbf16>,
    %c5_i32 = arith.constant 5 : i32
    %c2_i32_60 = arith.constant 2 : i32
    %167 = arith.muli %c5_i32, %c2_i32_60 : i32
    %168 = arith.index_cast %167 : i32 to index
    %c0_61 = arith.constant 0 : index
    %169 = vector.load %arg13[%168, %c0_61] : memref<16x128xbf16, #tpu.memory_space<vmem>>, vector<2x128xbf16>
    %170 = arith.extf %169 : vector<2x128xbf16> to vector<2x128xf32>
    %171 = arith.truncf %163 : vector<2x32xf32> to vector<2x32xbf16>
    %cst_62 = arith.constant dense<0.000000e+00> : vector<2x128xf32>
    %172 = tpu.matmul %171, %22, %cst_62 {dimension_numbers = #tpu.dot_dimension_numbers<[1], [0], [0], [1], [0, 0, 1, 1], [], []>} : vector<2x32xbf16>, vector<32x128xbf16>, vector<2x128xf32> -> vector<2x128xf32>
    %173 = arith.addf %170, %172 : vector<2x128xf32>
    %174 = arith.negf %173 : vector<2x128xf32>
    %175 = math.exp %174 : vector<2x128xf32>
    %cst_63 = arith.constant 1.000000e+00 : f32
    %176 = vector.broadcast %cst_63 : f32 to vector<2x128xf32>
    %177 = arith.addf %176, %175 : vector<2x128xf32>
    %178 = arith.divf %176, %177 : vector<2x128xf32>
    %179 = vector.extract_strided_slice %178 {offsets = [0, 0], sizes = [2, 32], strides = [1, 1]} : vector<2x128xf32> to vector<2x32xf32>
    %180 = vector.extract_strided_slice %178 {offsets = [0, 32], sizes = [2, 32], strides = [1, 1]} : vector<2x128xf32> to vector<2x32xf32>
    %181 = vector.extract_strided_slice %178 {offsets = [0, 64], sizes = [2, 32], strides = [1, 1]} : vector<2x128xf32> to vector<2x32xf32>
    %cst_64 = arith.constant 2.000000e+00 : f32
    %182 = vector.broadcast %cst_64 : f32 to vector<2x32xf32>
    %183 = arith.mulf %182, %181 : vector<2x32xf32>
    %cst_65 = arith.constant 1.000000e+00 : f32
    %184 = vector.broadcast %cst_65 : f32 to vector<2x32xf32>
    %185 = arith.subf %183, %184 : vector<2x32xf32>
    %186 = vector.extract_strided_slice %178 {offsets = [0, 96], sizes = [2, 32], strides = [1, 1]} : vector<2x128xf32> to vector<2x32xf32>
    %187 = arith.mulf %180, %161 : vector<2x32xf32>
    %188 = arith.mulf %179, %185 : vector<2x32xf32>
    %189 = arith.addf %187, %188 : vector<2x32xf32>
    %190 = math.tanh %189 : vector<2x32xf32>
    %191 = arith.mulf %186, %190 : vector<2x32xf32>
    %192 = arith.truncf %191 : vector<2x32xf32> to vector<2x32xbf16>
    %193 = arith.index_cast %167 : i32 to index
    %c0_66 = arith.constant 0 : index
    %194 = vector.load %arg12[%193, %c0_66] : memref<16x32xbf16, #tpu.memory_space<vmem>>, vector<2x32xbf16>
    tpu.vector_store %arg12[%193, %c0_66], %192 {strides = array<i32>} : memref<16x32xbf16, #tpu.memory_space<vmem>>, vector<2x32xbf16>,
    %c6_i32 = arith.constant 6 : i32
    %c2_i32_67 = arith.constant 2 : i32
    %195 = arith.muli %c6_i32, %c2_i32_67 : i32
    %196 = arith.index_cast %195 : i32 to index
    %c0_68 = arith.constant 0 : index
    %197 = vector.load %arg13[%196, %c0_68] : memref<16x128xbf16, #tpu.memory_space<vmem>>, vector<2x128xbf16>
    %198 = arith.extf %197 : vector<2x128xbf16> to vector<2x128xf32>
    %199 = arith.truncf %191 : vector<2x32xf32> to vector<2x32xbf16>
    %cst_69 = arith.constant dense<0.000000e+00> : vector<2x128xf32>
    %200 = tpu.matmul %199, %22, %cst_69 {dimension_numbers = #tpu.dot_dimension_numbers<[1], [0], [0], [1], [0, 0, 1, 1], [], []>} : vector<2x32xbf16>, vector<32x128xbf16>, vector<2x128xf32> -> vector<2x128xf32>
    %201 = arith.addf %198, %200 : vector<2x128xf32>
    %202 = arith.negf %201 : vector<2x128xf32>
    %203 = math.exp %202 : vector<2x128xf32>
    %cst_70 = arith.constant 1.000000e+00 : f32
    %204 = vector.broadcast %cst_70 : f32 to vector<2x128xf32>
    %205 = arith.addf %204, %203 : vector<2x128xf32>
    %206 = arith.divf %204, %205 : vector<2x128xf32>
    %207 = vector.extract_strided_slice %206 {offsets = [0, 0], sizes = [2, 32], strides = [1, 1]} : vector<2x128xf32> to vector<2x32xf32>
    %208 = vector.extract_strided_slice %206 {offsets = [0, 32], sizes = [2, 32], strides = [1, 1]} : vector<2x128xf32> to vector<2x32xf32>
    %209 = vector.extract_strided_slice %206 {offsets = [0, 64], sizes = [2, 32], strides = [1, 1]} : vector<2x128xf32> to vector<2x32xf32>
    %cst_71 = arith.constant 2.000000e+00 : f32
    %210 = vector.broadcast %cst_71 : f32 to vector<2x32xf32>
    %211 = arith.mulf %210, %209 : vector<2x32xf32>
    %cst_72 = arith.constant 1.000000e+00 : f32
    %212 = vector.broadcast %cst_72 : f32 to vector<2x32xf32>
    %213 = arith.subf %211, %212 : vector<2x32xf32>
    %214 = vector.extract_strided_slice %206 {offsets = [0, 96], sizes = [2, 32], strides = [1, 1]} : vector<2x128xf32> to vector<2x32xf32>
    %215 = arith.mulf %208, %189 : vector<2x32xf32>
    %216 = arith.mulf %207, %213 : vector<2x32xf32>
    %217 = arith.addf %215, %216 : vector<2x32xf32>
    %218 = math.tanh %217 : vector<2x32xf32>
    %219 = arith.mulf %214, %218 : vector<2x32xf32>
    %220 = arith.truncf %219 : vector<2x32xf32> to vector<2x32xbf16>
    %221 = arith.index_cast %195 : i32 to index
    %c0_73 = arith.constant 0 : index
    %222 = vector.load %arg12[%221, %c0_73] : memref<16x32xbf16, #tpu.memory_space<vmem>>, vector<2x32xbf16>
    tpu.vector_store %arg12[%221, %c0_73], %220 {strides = array<i32>} : memref<16x32xbf16, #tpu.memory_space<vmem>>, vector<2x32xbf16>,
    %c7_i32 = arith.constant 7 : i32
    %c2_i32_74 = arith.constant 2 : i32
    %223 = arith.muli %c7_i32, %c2_i32_74 : i32
    %224 = arith.index_cast %223 : i32 to index
    %c0_75 = arith.constant 0 : index
    %225 = vector.load %arg13[%224, %c0_75] : memref<16x128xbf16, #tpu.memory_space<vmem>>, vector<2x128xbf16>
    %226 = arith.extf %225 : vector<2x128xbf16> to vector<2x128xf32>
    %227 = arith.truncf %219 : vector<2x32xf32> to vector<2x32xbf16>
    %cst_76 = arith.constant dense<0.000000e+00> : vector<2x128xf32>
    %228 = tpu.matmul %227, %22, %cst_76 {dimension_numbers = #tpu.dot_dimension_numbers<[1], [0], [0], [1], [0, 0, 1, 1], [], []>} : vector<2x32xbf16>, vector<32x128xbf16>, vector<2x128xf32> -> vector<2x128xf32>
    %229 = arith.addf %226, %228 : vector<2x128xf32>
    %230 = arith.negf %229 : vector<2x128xf32>
    %231 = math.exp %230 : vector<2x128xf32>
    %cst_77 = arith.constant 1.000000e+00 : f32
    %232 = vector.broadcast %cst_77 : f32 to vector<2x128xf32>
    %233 = arith.addf %232, %231 : vector<2x128xf32>
    %234 = arith.divf %232, %233 : vector<2x128xf32>
    %235 = vector.extract_strided_slice %234 {offsets = [0, 0], sizes = [2, 32], strides = [1, 1]} : vector<2x128xf32> to vector<2x32xf32>
    %236 = vector.extract_strided_slice %234 {offsets = [0, 32], sizes = [2, 32], strides = [1, 1]} : vector<2x128xf32> to vector<2x32xf32>
    %237 = vector.extract_strided_slice %234 {offsets = [0, 64], sizes = [2, 32], strides = [1, 1]} : vector<2x128xf32> to vector<2x32xf32>
    %cst_78 = arith.constant 2.000000e+00 : f32
    %238 = vector.broadcast %cst_78 : f32 to vector<2x32xf32>
    %239 = arith.mulf %238, %237 : vector<2x32xf32>
    %cst_79 = arith.constant 1.000000e+00 : f32
    %240 = vector.broadcast %cst_79 : f32 to vector<2x32xf32>
    %241 = arith.subf %239, %240 : vector<2x32xf32>
    %242 = vector.extract_strided_slice %234 {offsets = [0, 96], sizes = [2, 32], strides = [1, 1]} : vector<2x128xf32> to vector<2x32xf32>
    %243 = arith.mulf %236, %217 : vector<2x32xf32>
    %244 = arith.mulf %235, %241 : vector<2x32xf32>
    %245 = arith.addf %243, %244 : vector<2x32xf32>
    %246 = math.tanh %245 : vector<2x32xf32>
    %247 = arith.mulf %242, %246 : vector<2x32xf32>
    %248 = arith.truncf %247 : vector<2x32xf32> to vector<2x32xbf16>
    %249 = arith.index_cast %223 : i32 to index
    %c0_80 = arith.constant 0 : index
    %250 = vector.load %arg12[%249, %c0_80] : memref<16x32xbf16, #tpu.memory_space<vmem>>, vector<2x32xbf16>
    tpu.vector_store %arg12[%249, %c0_80], %248 {strides = array<i32>} : memref<16x32xbf16, #tpu.memory_space<vmem>>, vector<2x32xbf16>,
    %c8_i32 = arith.constant 8 : i32
    %c0_81 = arith.constant 0 : index
    %c0_82 = arith.constant 0 : index
    %c0_83 = arith.constant 0 : index
    %251 = vector.load %arg10[%c0_81, %c0_82, %c0_83] : memref<2x2x32xf32, #tpu.memory_space<vmem>>, vector<1x2x32xf32>
    %252 = vector.shape_cast %251 : vector<1x2x32xf32> to vector<2x32xf32>
    %253 = vector.shape_cast %247 : vector<2x32xf32> to vector<1x2x32xf32>
    tpu.vector_store %arg10[%c0_81, %c0_82, %c0_83], %253 {strides = array<i32>} : memref<2x2x32xf32, #tpu.memory_space<vmem>>, vector<1x2x32xf32>,
    %c0_84 = arith.constant 0 : index
    %c0_85 = arith.constant 0 : index
    %c0_86 = arith.constant 0 : index
    %254 = vector.load %arg11[%c0_84, %c0_85, %c0_86] : memref<2x2x32xf32, #tpu.memory_space<vmem>>, vector<1x2x32xf32>
    %255 = vector.shape_cast %254 : vector<1x2x32xf32> to vector<2x32xf32>
    %256 = vector.shape_cast %245 : vector<2x32xf32> to vector<1x2x32xf32>
    tpu.vector_store %arg11[%c0_84, %c0_85, %c0_86], %256 {strides = array<i32>} : memref<2x2x32xf32, #tpu.memory_space<vmem>>, vector<1x2x32xf32>,
    %c0_87 = arith.constant 0 : index
    %c0_88 = arith.constant 0 : index
    %257 = vector.load %arg12[%c0_87, %c0_88] : memref<16x32xbf16, #tpu.memory_space<vmem>>, vector<16x32xbf16>
    %c1 = arith.constant 1 : index
    %c0_89 = arith.constant 0 : index
    %c0_90 = arith.constant 0 : index
    %258 = vector.load %arg4[%c1, %c0_89, %c0_90] : memref<2x32x128xbf16, #tpu.memory_space<vmem>>, vector<1x32x128xbf16>
    %259 = vector.shape_cast %258 : vector<1x32x128xbf16> to vector<32x128xbf16>
    %cst_91 = arith.constant dense<0.000000e+00> : vector<16x128xf32>
    %260 = tpu.matmul %257, %259, %cst_91 {dimension_numbers = #tpu.dot_dimension_numbers<[1], [0], [0], [1], [0, 0, 1, 1], [], []>} : vector<16x32xbf16>, vector<32x128xbf16>, vector<16x128xf32> -> vector<16x128xf32>
    %c1_92 = arith.constant 1 : index
    %c0_93 = arith.constant 0 : index
    %c0_94 = arith.constant 0 : index
    %261 = vector.load %arg6[%c1_92, %c0_93, %c0_94] : memref<2x1x128xf32, #tpu.memory_space<vmem>>, vector<1x1x128xf32>
    %262 = vector.shape_cast %261 : vector<1x1x128xf32> to vector<1x128xf32>
    %263 = vector.broadcast %262 : vector<1x128xf32> to vector<16x128xf32>
    %264 = arith.addf %260, %263 : vector<16x128xf32>
    %265 = arith.truncf %264 : vector<16x128xf32> to vector<16x128xbf16>
    %c0_95 = arith.constant 0 : index
    %c0_96 = arith.constant 0 : index
    %266 = vector.load %arg13[%c0_95, %c0_96] : memref<16x128xbf16, #tpu.memory_space<vmem>>, vector<16x128xbf16>
    tpu.vector_store %arg13[%c0_95, %c0_96], %265 {strides = array<i32>} : memref<16x128xbf16, #tpu.memory_space<vmem>>, vector<16x128xbf16>,
    %c1_97 = arith.constant 1 : index
    %c0_98 = arith.constant 0 : index
    %c0_99 = arith.constant 0 : index
    %267 = vector.load %arg5[%c1_97, %c0_98, %c0_99] : memref<2x32x128xbf16, #tpu.memory_space<vmem>>, vector<1x32x128xbf16>
    %268 = vector.shape_cast %267 : vector<1x32x128xbf16> to vector<32x128xbf16>
    %c1_100 = arith.constant 1 : index
    %c0_101 = arith.constant 0 : index
    %c0_102 = arith.constant 0 : index
    %269 = vector.load %arg2[%c1_100, %c0_101, %c0_102] : memref<2x2x32xf32, #tpu.memory_space<vmem>>, vector<1x2x32xf32>
    %270 = vector.shape_cast %269 : vector<1x2x32xf32> to vector<2x32xf32>
    %c1_103 = arith.constant 1 : index
    %c0_104 = arith.constant 0 : index
    %c0_105 = arith.constant 0 : index
    %271 = vector.load %arg3[%c1_103, %c0_104, %c0_105] : memref<2x2x32xf32, #tpu.memory_space<vmem>>, vector<1x2x32xf32>
    %272 = vector.shape_cast %271 : vector<1x2x32xf32> to vector<2x32xf32>
    %c0_i32_106 = arith.constant 0 : i32
    %c2_i32_107 = arith.constant 2 : i32
    %273 = arith.muli %c0_i32_106, %c2_i32_107 : i32
    %274 = arith.index_cast %273 : i32 to index
    %c0_108 = arith.constant 0 : index
    %275 = vector.load %arg13[%274, %c0_108] : memref<16x128xbf16, #tpu.memory_space<vmem>>, vector<2x128xbf16>
    %276 = arith.extf %275 : vector<2x128xbf16> to vector<2x128xf32>
    %277 = arith.truncf %270 : vector<2x32xf32> to vector<2x32xbf16>
    %cst_109 = arith.constant dense<0.000000e+00> : vector<2x128xf32>
    %278 = tpu.matmul %277, %268, %cst_109 {dimension_numbers = #tpu.dot_dimension_numbers<[1], [0], [0], [1], [0, 0, 1, 1], [], []>} : vector<2x32xbf16>, vector<32x128xbf16>, vector<2x128xf32> -> vector<2x128xf32>
    %279 = arith.addf %276, %278 : vector<2x128xf32>
    %280 = arith.negf %279 : vector<2x128xf32>
    %281 = math.exp %280 : vector<2x128xf32>
    %cst_110 = arith.constant 1.000000e+00 : f32
    %282 = vector.broadcast %cst_110 : f32 to vector<2x128xf32>
    %283 = arith.addf %282, %281 : vector<2x128xf32>
    %284 = arith.divf %282, %283 : vector<2x128xf32>
    %285 = vector.extract_strided_slice %284 {offsets = [0, 0], sizes = [2, 32], strides = [1, 1]} : vector<2x128xf32> to vector<2x32xf32>
    %286 = vector.extract_strided_slice %284 {offsets = [0, 32], sizes = [2, 32], strides = [1, 1]} : vector<2x128xf32> to vector<2x32xf32>
    %287 = vector.extract_strided_slice %284 {offsets = [0, 64], sizes = [2, 32], strides = [1, 1]} : vector<2x128xf32> to vector<2x32xf32>
    %cst_111 = arith.constant 2.000000e+00 : f32
    %288 = vector.broadcast %cst_111 : f32 to vector<2x32xf32>
    %289 = arith.mulf %288, %287 : vector<2x32xf32>
    %cst_112 = arith.constant 1.000000e+00 : f32
    %290 = vector.broadcast %cst_112 : f32 to vector<2x32xf32>
    %291 = arith.subf %289, %290 : vector<2x32xf32>
    %292 = vector.extract_strided_slice %284 {offsets = [0, 96], sizes = [2, 32], strides = [1, 1]} : vector<2x128xf32> to vector<2x32xf32>
    %293 = arith.mulf %286, %272 : vector<2x32xf32>
    %294 = arith.mulf %285, %291 : vector<2x32xf32>
    %295 = arith.addf %293, %294 : vector<2x32xf32>
    %296 = math.tanh %295 : vector<2x32xf32>
    %297 = arith.mulf %292, %296 : vector<2x32xf32>
    %c1_i32_113 = arith.constant 1 : i32
    %c2_i32_114 = arith.constant 2 : i32
    %298 = arith.muli %c1_i32_113, %c2_i32_114 : i32
    %299 = arith.index_cast %298 : i32 to index
    %c0_115 = arith.constant 0 : index
    %300 = vector.load %arg13[%299, %c0_115] : memref<16x128xbf16, #tpu.memory_space<vmem>>, vector<2x128xbf16>
    %301 = arith.extf %300 : vector<2x128xbf16> to vector<2x128xf32>
    %302 = arith.truncf %297 : vector<2x32xf32> to vector<2x32xbf16>
    %cst_116 = arith.constant dense<0.000000e+00> : vector<2x128xf32>
    %303 = tpu.matmul %302, %268, %cst_116 {dimension_numbers = #tpu.dot_dimension_numbers<[1], [0], [0], [1], [0, 0, 1, 1], [], []>} : vector<2x32xbf16>, vector<32x128xbf16>, vector<2x128xf32> -> vector<2x128xf32>
    %304 = arith.addf %301, %303 : vector<2x128xf32>
    %305 = arith.negf %304 : vector<2x128xf32>
    %306 = math.exp %305 : vector<2x128xf32>
    %cst_117 = arith.constant 1.000000e+00 : f32
    %307 = vector.broadcast %cst_117 : f32 to vector<2x128xf32>
    %308 = arith.addf %307, %306 : vector<2x128xf32>
    %309 = arith.divf %307, %308 : vector<2x128xf32>
    %310 = vector.extract_strided_slice %309 {offsets = [0, 0], sizes = [2, 32], strides = [1, 1]} : vector<2x128xf32> to vector<2x32xf32>
    %311 = vector.extract_strided_slice %309 {offsets = [0, 32], sizes = [2, 32], strides = [1, 1]} : vector<2x128xf32> to vector<2x32xf32>
    %312 = vector.extract_strided_slice %309 {offsets = [0, 64], sizes = [2, 32], strides = [1, 1]} : vector<2x128xf32> to vector<2x32xf32>
    %cst_118 = arith.constant 2.000000e+00 : f32
    %313 = vector.broadcast %cst_118 : f32 to vector<2x32xf32>
    %314 = arith.mulf %313, %312 : vector<2x32xf32>
    %cst_119 = arith.constant 1.000000e+00 : f32
    %315 = vector.broadcast %cst_119 : f32 to vector<2x32xf32>
    %316 = arith.subf %314, %315 : vector<2x32xf32>
    %317 = vector.extract_strided_slice %309 {offsets = [0, 96], sizes = [2, 32], strides = [1, 1]} : vector<2x128xf32> to vector<2x32xf32>
    %318 = arith.mulf %311, %295 : vector<2x32xf32>
    %319 = arith.mulf %310, %316 : vector<2x32xf32>
    %320 = arith.addf %318, %319 : vector<2x32xf32>
    %321 = math.tanh %320 : vector<2x32xf32>
    %322 = arith.mulf %317, %321 : vector<2x32xf32>
    %c2_i32_120 = arith.constant 2 : i32
    %c2_i32_121 = arith.constant 2 : i32
    %323 = arith.muli %c2_i32_120, %c2_i32_121 : i32
    %324 = arith.index_cast %323 : i32 to index
    %c0_122 = arith.constant 0 : index
    %325 = vector.load %arg13[%324, %c0_122] : memref<16x128xbf16, #tpu.memory_space<vmem>>, vector<2x128xbf16>
    %326 = arith.extf %325 : vector<2x128xbf16> to vector<2x128xf32>
    %327 = arith.truncf %322 : vector<2x32xf32> to vector<2x32xbf16>
    %cst_123 = arith.constant dense<0.000000e+00> : vector<2x128xf32>
    %328 = tpu.matmul %327, %268, %cst_123 {dimension_numbers = #tpu.dot_dimension_numbers<[1], [0], [0], [1], [0, 0, 1, 1], [], []>} : vector<2x32xbf16>, vector<32x128xbf16>, vector<2x128xf32> -> vector<2x128xf32>
    %329 = arith.addf %326, %328 : vector<2x128xf32>
    %330 = arith.negf %329 : vector<2x128xf32>
    %331 = math.exp %330 : vector<2x128xf32>
    %cst_124 = arith.constant 1.000000e+00 : f32
    %332 = vector.broadcast %cst_124 : f32 to vector<2x128xf32>
    %333 = arith.addf %332, %331 : vector<2x128xf32>
    %334 = arith.divf %332, %333 : vector<2x128xf32>
    %335 = vector.extract_strided_slice %334 {offsets = [0, 0], sizes = [2, 32], strides = [1, 1]} : vector<2x128xf32> to vector<2x32xf32>
    %336 = vector.extract_strided_slice %334 {offsets = [0, 32], sizes = [2, 32], strides = [1, 1]} : vector<2x128xf32> to vector<2x32xf32>
    %337 = vector.extract_strided_slice %334 {offsets = [0, 64], sizes = [2, 32], strides = [1, 1]} : vector<2x128xf32> to vector<2x32xf32>
    %cst_125 = arith.constant 2.000000e+00 : f32
    %338 = vector.broadcast %cst_125 : f32 to vector<2x32xf32>
    %339 = arith.mulf %338, %337 : vector<2x32xf32>
    %cst_126 = arith.constant 1.000000e+00 : f32
    %340 = vector.broadcast %cst_126 : f32 to vector<2x32xf32>
    %341 = arith.subf %339, %340 : vector<2x32xf32>
    %342 = vector.extract_strided_slice %334 {offsets = [0, 96], sizes = [2, 32], strides = [1, 1]} : vector<2x128xf32> to vector<2x32xf32>
    %343 = arith.mulf %336, %320 : vector<2x32xf32>
    %344 = arith.mulf %335, %341 : vector<2x32xf32>
    %345 = arith.addf %343, %344 : vector<2x32xf32>
    %346 = math.tanh %345 : vector<2x32xf32>
    %347 = arith.mulf %342, %346 : vector<2x32xf32>
    %c3_i32_127 = arith.constant 3 : i32
    %c2_i32_128 = arith.constant 2 : i32
    %348 = arith.muli %c3_i32_127, %c2_i32_128 : i32
    %349 = arith.index_cast %348 : i32 to index
    %c0_129 = arith.constant 0 : index
    %350 = vector.load %arg13[%349, %c0_129] : memref<16x128xbf16, #tpu.memory_space<vmem>>, vector<2x128xbf16>
    %351 = arith.extf %350 : vector<2x128xbf16> to vector<2x128xf32>
    %352 = arith.truncf %347 : vector<2x32xf32> to vector<2x32xbf16>
    %cst_130 = arith.constant dense<0.000000e+00> : vector<2x128xf32>
    %353 = tpu.matmul %352, %268, %cst_130 {dimension_numbers = #tpu.dot_dimension_numbers<[1], [0], [0], [1], [0, 0, 1, 1], [], []>} : vector<2x32xbf16>, vector<32x128xbf16>, vector<2x128xf32> -> vector<2x128xf32>
    %354 = arith.addf %351, %353 : vector<2x128xf32>
    %355 = arith.negf %354 : vector<2x128xf32>
    %356 = math.exp %355 : vector<2x128xf32>
    %cst_131 = arith.constant 1.000000e+00 : f32
    %357 = vector.broadcast %cst_131 : f32 to vector<2x128xf32>
    %358 = arith.addf %357, %356 : vector<2x128xf32>
    %359 = arith.divf %357, %358 : vector<2x128xf32>
    %360 = vector.extract_strided_slice %359 {offsets = [0, 0], sizes = [2, 32], strides = [1, 1]} : vector<2x128xf32> to vector<2x32xf32>
    %361 = vector.extract_strided_slice %359 {offsets = [0, 32], sizes = [2, 32], strides = [1, 1]} : vector<2x128xf32> to vector<2x32xf32>
    %362 = vector.extract_strided_slice %359 {offsets = [0, 64], sizes = [2, 32], strides = [1, 1]} : vector<2x128xf32> to vector<2x32xf32>
    %cst_132 = arith.constant 2.000000e+00 : f32
    %363 = vector.broadcast %cst_132 : f32 to vector<2x32xf32>
    %364 = arith.mulf %363, %362 : vector<2x32xf32>
    %cst_133 = arith.constant 1.000000e+00 : f32
    %365 = vector.broadcast %cst_133 : f32 to vector<2x32xf32>
    %366 = arith.subf %364, %365 : vector<2x32xf32>
    %367 = vector.extract_strided_slice %359 {offsets = [0, 96], sizes = [2, 32], strides = [1, 1]} : vector<2x128xf32> to vector<2x32xf32>
    %368 = arith.mulf %361, %345 : vector<2x32xf32>
    %369 = arith.mulf %360, %366 : vector<2x32xf32>
    %370 = arith.addf %368, %369 : vector<2x32xf32>
    %371 = math.tanh %370 : vector<2x32xf32>
    %372 = arith.mulf %367, %371 : vector<2x32xf32>
    %c4_i32_134 = arith.constant 4 : i32
    %c2_i32_135 = arith.constant 2 : i32
    %373 = arith.muli %c4_i32_134, %c2_i32_135 : i32
    %374 = arith.index_cast %373 : i32 to index
    %c0_136 = arith.constant 0 : index
    %375 = vector.load %arg13[%374, %c0_136] : memref<16x128xbf16, #tpu.memory_space<vmem>>, vector<2x128xbf16>
    %376 = arith.extf %375 : vector<2x128xbf16> to vector<2x128xf32>
    %377 = arith.truncf %372 : vector<2x32xf32> to vector<2x32xbf16>
    %cst_137 = arith.constant dense<0.000000e+00> : vector<2x128xf32>
    %378 = tpu.matmul %377, %268, %cst_137 {dimension_numbers = #tpu.dot_dimension_numbers<[1], [0], [0], [1], [0, 0, 1, 1], [], []>} : vector<2x32xbf16>, vector<32x128xbf16>, vector<2x128xf32> -> vector<2x128xf32>
    %379 = arith.addf %376, %378 : vector<2x128xf32>
    %380 = arith.negf %379 : vector<2x128xf32>
    %381 = math.exp %380 : vector<2x128xf32>
    %cst_138 = arith.constant 1.000000e+00 : f32
    %382 = vector.broadcast %cst_138 : f32 to vector<2x128xf32>
    %383 = arith.addf %382, %381 : vector<2x128xf32>
    %384 = arith.divf %382, %383 : vector<2x128xf32>
    %385 = vector.extract_strided_slice %384 {offsets = [0, 0], sizes = [2, 32], strides = [1, 1]} : vector<2x128xf32> to vector<2x32xf32>
    %386 = vector.extract_strided_slice %384 {offsets = [0, 32], sizes = [2, 32], strides = [1, 1]} : vector<2x128xf32> to vector<2x32xf32>
    %387 = vector.extract_strided_slice %384 {offsets = [0, 64], sizes = [2, 32], strides = [1, 1]} : vector<2x128xf32> to vector<2x32xf32>
    %cst_139 = arith.constant 2.000000e+00 : f32
    %388 = vector.broadcast %cst_139 : f32 to vector<2x32xf32>
    %389 = arith.mulf %388, %387 : vector<2x32xf32>
    %cst_140 = arith.constant 1.000000e+00 : f32
    %390 = vector.broadcast %cst_140 : f32 to vector<2x32xf32>
    %391 = arith.subf %389, %390 : vector<2x32xf32>
    %392 = vector.extract_strided_slice %384 {offsets = [0, 96], sizes = [2, 32], strides = [1, 1]} : vector<2x128xf32> to vector<2x32xf32>
    %393 = arith.mulf %386, %370 : vector<2x32xf32>
    %394 = arith.mulf %385, %391 : vector<2x32xf32>
    %395 = arith.addf %393, %394 : vector<2x32xf32>
    %396 = math.tanh %395 : vector<2x32xf32>
    %397 = arith.mulf %392, %396 : vector<2x32xf32>
    %c5_i32_141 = arith.constant 5 : i32
    %c2_i32_142 = arith.constant 2 : i32
    %398 = arith.muli %c5_i32_141, %c2_i32_142 : i32
    %399 = arith.index_cast %398 : i32 to index
    %c0_143 = arith.constant 0 : index
    %400 = vector.load %arg13[%399, %c0_143] : memref<16x128xbf16, #tpu.memory_space<vmem>>, vector<2x128xbf16>
    %401 = arith.extf %400 : vector<2x128xbf16> to vector<2x128xf32>
    %402 = arith.truncf %397 : vector<2x32xf32> to vector<2x32xbf16>
    %cst_144 = arith.constant dense<0.000000e+00> : vector<2x128xf32>
    %403 = tpu.matmul %402, %268, %cst_144 {dimension_numbers = #tpu.dot_dimension_numbers<[1], [0], [0], [1], [0, 0, 1, 1], [], []>} : vector<2x32xbf16>, vector<32x128xbf16>, vector<2x128xf32> -> vector<2x128xf32>
    %404 = arith.addf %401, %403 : vector<2x128xf32>
    %405 = arith.negf %404 : vector<2x128xf32>
    %406 = math.exp %405 : vector<2x128xf32>
    %cst_145 = arith.constant 1.000000e+00 : f32
    %407 = vector.broadcast %cst_145 : f32 to vector<2x128xf32>
    %408 = arith.addf %407, %406 : vector<2x128xf32>
    %409 = arith.divf %407, %408 : vector<2x128xf32>
    %410 = vector.extract_strided_slice %409 {offsets = [0, 0], sizes = [2, 32], strides = [1, 1]} : vector<2x128xf32> to vector<2x32xf32>
    %411 = vector.extract_strided_slice %409 {offsets = [0, 32], sizes = [2, 32], strides = [1, 1]} : vector<2x128xf32> to vector<2x32xf32>
    %412 = vector.extract_strided_slice %409 {offsets = [0, 64], sizes = [2, 32], strides = [1, 1]} : vector<2x128xf32> to vector<2x32xf32>
    %cst_146 = arith.constant 2.000000e+00 : f32
    %413 = vector.broadcast %cst_146 : f32 to vector<2x32xf32>
    %414 = arith.mulf %413, %412 : vector<2x32xf32>
    %cst_147 = arith.constant 1.000000e+00 : f32
    %415 = vector.broadcast %cst_147 : f32 to vector<2x32xf32>
    %416 = arith.subf %414, %415 : vector<2x32xf32>
    %417 = vector.extract_strided_slice %409 {offsets = [0, 96], sizes = [2, 32], strides = [1, 1]} : vector<2x128xf32> to vector<2x32xf32>
    %418 = arith.mulf %411, %395 : vector<2x32xf32>
    %419 = arith.mulf %410, %416 : vector<2x32xf32>
    %420 = arith.addf %418, %419 : vector<2x32xf32>
    %421 = math.tanh %420 : vector<2x32xf32>
    %422 = arith.mulf %417, %421 : vector<2x32xf32>
    %c6_i32_148 = arith.constant 6 : i32
    %c2_i32_149 = arith.constant 2 : i32
    %423 = arith.muli %c6_i32_148, %c2_i32_149 : i32
    %424 = arith.index_cast %423 : i32 to index
    %c0_150 = arith.constant 0 : index
    %425 = vector.load %arg13[%424, %c0_150] : memref<16x128xbf16, #tpu.memory_space<vmem>>, vector<2x128xbf16>
    %426 = arith.extf %425 : vector<2x128xbf16> to vector<2x128xf32>
    %427 = arith.truncf %422 : vector<2x32xf32> to vector<2x32xbf16>
    %cst_151 = arith.constant dense<0.000000e+00> : vector<2x128xf32>
    %428 = tpu.matmul %427, %268, %cst_151 {dimension_numbers = #tpu.dot_dimension_numbers<[1], [0], [0], [1], [0, 0, 1, 1], [], []>} : vector<2x32xbf16>, vector<32x128xbf16>, vector<2x128xf32> -> vector<2x128xf32>
    %429 = arith.addf %426, %428 : vector<2x128xf32>
    %430 = arith.negf %429 : vector<2x128xf32>
    %431 = math.exp %430 : vector<2x128xf32>
    %cst_152 = arith.constant 1.000000e+00 : f32
    %432 = vector.broadcast %cst_152 : f32 to vector<2x128xf32>
    %433 = arith.addf %432, %431 : vector<2x128xf32>
    %434 = arith.divf %432, %433 : vector<2x128xf32>
    %435 = vector.extract_strided_slice %434 {offsets = [0, 0], sizes = [2, 32], strides = [1, 1]} : vector<2x128xf32> to vector<2x32xf32>
    %436 = vector.extract_strided_slice %434 {offsets = [0, 32], sizes = [2, 32], strides = [1, 1]} : vector<2x128xf32> to vector<2x32xf32>
    %437 = vector.extract_strided_slice %434 {offsets = [0, 64], sizes = [2, 32], strides = [1, 1]} : vector<2x128xf32> to vector<2x32xf32>
    %cst_153 = arith.constant 2.000000e+00 : f32
    %438 = vector.broadcast %cst_153 : f32 to vector<2x32xf32>
    %439 = arith.mulf %438, %437 : vector<2x32xf32>
    %cst_154 = arith.constant 1.000000e+00 : f32
    %440 = vector.broadcast %cst_154 : f32 to vector<2x32xf32>
    %441 = arith.subf %439, %440 : vector<2x32xf32>
    %442 = vector.extract_strided_slice %434 {offsets = [0, 96], sizes = [2, 32], strides = [1, 1]} : vector<2x128xf32> to vector<2x32xf32>
    %443 = arith.mulf %436, %420 : vector<2x32xf32>
    %444 = arith.mulf %435, %441 : vector<2x32xf32>
    %445 = arith.addf %443, %444 : vector<2x32xf32>
    %446 = math.tanh %445 : vector<2x32xf32>
    %447 = arith.mulf %442, %446 : vector<2x32xf32>
    %c7_i32_155 = arith.constant 7 : i32
    %c2_i32_156 = arith.constant 2 : i32
    %448 = arith.muli %c7_i32_155, %c2_i32_156 : i32
    %449 = arith.index_cast %448 : i32 to index
    %c0_157 = arith.constant 0 : index
    %450 = vector.load %arg13[%449, %c0_157] : memref<16x128xbf16, #tpu.memory_space<vmem>>, vector<2x128xbf16>
    %451 = arith.extf %450 : vector<2x128xbf16> to vector<2x128xf32>
    %452 = arith.truncf %447 : vector<2x32xf32> to vector<2x32xbf16>
    %cst_158 = arith.constant dense<0.000000e+00> : vector<2x128xf32>
    %453 = tpu.matmul %452, %268, %cst_158 {dimension_numbers = #tpu.dot_dimension_numbers<[1], [0], [0], [1], [0, 0, 1, 1], [], []>} : vector<2x32xbf16>, vector<32x128xbf16>, vector<2x128xf32> -> vector<2x128xf32>
    %454 = arith.addf %451, %453 : vector<2x128xf32>
    %455 = arith.negf %454 : vector<2x128xf32>
    %456 = math.exp %455 : vector<2x128xf32>
    %cst_159 = arith.constant 1.000000e+00 : f32
    %457 = vector.broadcast %cst_159 : f32 to vector<2x128xf32>
    %458 = arith.addf %457, %456 : vector<2x128xf32>
    %459 = arith.divf %457, %458 : vector<2x128xf32>
    %460 = vector.extract_strided_slice %459 {offsets = [0, 0], sizes = [2, 32], strides = [1, 1]} : vector<2x128xf32> to vector<2x32xf32>
    %461 = vector.extract_strided_slice %459 {offsets = [0, 32], sizes = [2, 32], strides = [1, 1]} : vector<2x128xf32> to vector<2x32xf32>
    %462 = vector.extract_strided_slice %459 {offsets = [0, 64], sizes = [2, 32], strides = [1, 1]} : vector<2x128xf32> to vector<2x32xf32>
    %cst_160 = arith.constant 2.000000e+00 : f32
    %463 = vector.broadcast %cst_160 : f32 to vector<2x32xf32>
    %464 = arith.mulf %463, %462 : vector<2x32xf32>
    %cst_161 = arith.constant 1.000000e+00 : f32
    %465 = vector.broadcast %cst_161 : f32 to vector<2x32xf32>
    %466 = arith.subf %464, %465 : vector<2x32xf32>
    %467 = vector.extract_strided_slice %459 {offsets = [0, 96], sizes = [2, 32], strides = [1, 1]} : vector<2x128xf32> to vector<2x32xf32>
    %468 = arith.mulf %461, %445 : vector<2x32xf32>
    %469 = arith.mulf %460, %466 : vector<2x32xf32>
    %470 = arith.addf %468, %469 : vector<2x32xf32>
    %471 = math.tanh %470 : vector<2x32xf32>
    %472 = arith.mulf %467, %471 : vector<2x32xf32>
    %c8_i32_162 = arith.constant 8 : i32
    %c1_163 = arith.constant 1 : index
    %c0_164 = arith.constant 0 : index
    %c0_165 = arith.constant 0 : index
    %473 = vector.load %arg10[%c1_163, %c0_164, %c0_165] : memref<2x2x32xf32, #tpu.memory_space<vmem>>, vector<1x2x32xf32>
    %474 = vector.shape_cast %473 : vector<1x2x32xf32> to vector<2x32xf32>
    %475 = vector.shape_cast %472 : vector<2x32xf32> to vector<1x2x32xf32>
    tpu.vector_store %arg10[%c1_163, %c0_164, %c0_165], %475 {strides = array<i32>} : memref<2x2x32xf32, #tpu.memory_space<vmem>>, vector<1x2x32xf32>,
    %c1_166 = arith.constant 1 : index
    %c0_167 = arith.constant 0 : index
    %c0_168 = arith.constant 0 : index
    %476 = vector.load %arg11[%c1_166, %c0_167, %c0_168] : memref<2x2x32xf32, #tpu.memory_space<vmem>>, vector<1x2x32xf32>
    %477 = vector.shape_cast %476 : vector<1x2x32xf32> to vector<2x32xf32>
    %478 = vector.shape_cast %470 : vector<2x32xf32> to vector<1x2x32xf32>
    tpu.vector_store %arg11[%c1_166, %c0_167, %c0_168], %478 {strides = array<i32>} : memref<2x2x32xf32, #tpu.memory_space<vmem>>, vector<1x2x32xf32>,
    %479 = arith.truncf %472 : vector<2x32xf32> to vector<2x32xbf16>
    %c0_169 = arith.constant 0 : index
    %c0_170 = arith.constant 0 : index
    %480 = vector.load %arg7[%c0_169, %c0_170] : memref<32x128xbf16, #tpu.memory_space<vmem>>, vector<32x128xbf16>
    %cst_171 = arith.constant dense<0.000000e+00> : vector<2x128xf32>
    %481 = tpu.matmul %479, %480, %cst_171 {dimension_numbers = #tpu.dot_dimension_numbers<[1], [0], [0], [1], [0, 0, 1, 1], [], []>} : vector<2x32xbf16>, vector<32x128xbf16>, vector<2x128xf32> -> vector<2x128xf32>
    %c0_172 = arith.constant 0 : index
    %c0_173 = arith.constant 0 : index
    %482 = vector.load %arg8[%c0_172, %c0_173] : memref<1x128xf32, #tpu.memory_space<vmem>>, vector<1x128xf32>
    %483 = vector.broadcast %482 : vector<1x128xf32> to vector<2x128xf32>
    %484 = arith.addf %481, %483 : vector<2x128xf32>
    %c0_174 = arith.constant 0 : index
    %c0_175 = arith.constant 0 : index
    %485 = vector.load %arg9[%c0_174, %c0_175] : memref<2x128xf32, #tpu.memory_space<vmem>>, vector<2x128xf32>
    tpu.vector_store %arg9[%c0_174, %c0_175], %484 {strides = array<i32>} : memref<2x128xf32, #tpu.memory_space<vmem>>, vector<2x128xf32>,
    return
  }
}

</mosaic_0001>

<llo_original>
// kernel: rnn_forward.1
$region0: #{rnn_forward.1}
  #allocation0 [shape = 'u32[]', space=smem, size = 0x4, offset = 0x4, fixed_abs, tag = 'smem constant byte address 0x4 - core index']
  #allocation1 [shape = 'u32[144,128]{1,0:T(1,128)}', space=vmem, size = 0x12000, scoped, tag = 'internal scratch']
  #allocation2 [shape = 'bf16[16,32]{1,0:T(16,128)(2,1)}', space=vmem, size = 0x1000, scoped, tag = 'scratch operand']
  #allocation3 [shape = 'bf16[16,128]{1,0:T(16,128)(2,1)}', space=vmem, size = 0x1000, scoped, tag = 'scratch operand']
  %s0 = inlined_call_operand.vmem [shape: s32[16,1], index: 0, kind: input, shape index: {}]
  %s1 = inlined_call_operand.vmem [shape: bf16[128,32], index: 1, kind: input, shape index: {}]
  %s2 = inlined_call_operand.vmem [shape: f32[2,2,32], index: 2, kind: input, shape index: {}, may-alias: {2,10}]
  %s3 = inlined_call_operand.vmem [shape: f32[2,2,32], index: 3, kind: input, shape index: {}, may-alias: {3,11}]
  %s4 = inlined_call_operand.vmem [shape: bf16[2,32,128], index: 4, kind: input, shape index: {}]
  %s5 = inlined_call_operand.vmem [shape: bf16[2,32,128], index: 5, kind: input, shape index: {}]
  %s6 = inlined_call_operand.vmem [shape: f32[2,1,128], index: 6, kind: input, shape index: {}]
  %s7 = inlined_call_operand.vmem [shape: bf16[32,128], index: 7, kind: input, shape index: {}]
  %s8 = inlined_call_operand.vmem [shape: f32[1,128], index: 8, kind: input, shape index: {}]
  %s9 = inlined_call_operand.hbm [shape: f32[2,128], index: 9, kind: output, shape index: {0}]
  %s10 = inlined_call_operand.vmem [shape: f32[2,2,32], index: 10, kind: output, shape index: {1}, may-alias: {2,10}]
  %s11 = inlined_call_operand.vmem [shape: f32[2,2,32], index: 11, kind: output, shape index: {2}, may-alias: {3,11}]
  %12 = xla_tuple %s9, %s10, %s11
  %s13 = sld [smem:[#allocation0]]
  $region62: #{rnn_forward.1} parent=0
    _
  %s15 = ssub.s32 1, %s13
  %s16 = scalar_select 0, %s15, %s13
  $region1: #{rnn_forward.1} parent=0
    #allocation4 [shape = 'u8[1024]{0}', space=vmem, size = 0x400, scoped, tag = 'output window, operand 0, single buffered']
    #allocation5 [shape = 's32[1]{0}', space=sflag, size = 0x4, scoped, tag = 'scoped memory for rnn_forward.1']
    %17 = vsyncpa [#allocation5], 0
    // Predicated region
    $region2: #{rnn_forward.1} parent=1 // pred_check
      _
    $region3: #{rnn_forward.1} parent=1 // pred_check_branch
      %19 = sbr.rel (0) target = $region5
    $region4: #{rnn_forward.1} parent=1 // pred_region
      _
    $region5: #{rnn_forward.1} parent=1 // pred_fallthru
      _
    // Predicated region
    $region6: #{rnn_forward.1} parent=1 // pred_check
      _
    $region7: #{rnn_forward.1} parent=1 // pred_check_branch
      %21 = sbr.rel (0) target = $region9
    $region8: #{rnn_forward.1} parent=1 // pred_region
      _
    $region9: #{rnn_forward.1} parent=1 // pred_fallthru
      _
    // Predicated region
    $region10: #{rnn_forward.1} parent=1 // pred_check
      _
    $region11: #{rnn_forward.1} parent=1 // pred_check_branch
      %23 = sbr.rel (0) target = $region13
    $region12: #{rnn_forward.1} parent=1 // pred_region
      _
    $region13: #{rnn_forward.1} parent=1 // pred_fallthru
      _
    // Predicated region
    $region14: #{rnn_forward.1} parent=1 // pred_check
      _
    $region15: #{rnn_forward.1} parent=1 // pred_check_branch
      %25 = sbr.rel (0) target = $region17
    $region16: #{rnn_forward.1} parent=1 // pred_region
      _
    $region17: #{rnn_forward.1} parent=1 // pred_fallthru
      _
    // Predicated region
    $region18: #{rnn_forward.1} parent=1 // pred_check
      _
    $region19: #{rnn_forward.1} parent=1 // pred_check_branch
      %27 = sbr.rel (0) target = $region21
    $region20: #{rnn_forward.1} parent=1 // pred_region
      _
    $region21: #{rnn_forward.1} parent=1 // pred_fallthru
      _
    // Predicated region
    $region22: #{rnn_forward.1} parent=1 // pred_check
      _
    $region23: #{rnn_forward.1} parent=1 // pred_check_branch
      %29 = sbr.rel (0) target = $region25
    $region24: #{rnn_forward.1} parent=1 // pred_region
      _
    $region25: #{rnn_forward.1} parent=1 // pred_fallthru
      _
    // Predicated region
    $region26: #{rnn_forward.1} parent=1 // pred_check
      _
    $region27: #{rnn_forward.1} parent=1 // pred_check_branch
      %31 = sbr.rel (0) target = $region29
    $region28: #{rnn_forward.1} parent=1 // pred_region
      _
    $region29: #{rnn_forward.1} parent=1 // pred_fallthru
      _
    // Predicated region
    $region30: #{rnn_forward.1} parent=1 // pred_check
      _
    $region31: #{rnn_forward.1} parent=1 // pred_check_branch
      %33 = sbr.rel (0) target = $region33
    $region32: #{rnn_forward.1} parent=1 // pred_region
      _
    $region33: #{rnn_forward.1} parent=1 // pred_fallthru
      _
    // Predicated region
    $region34: #{rnn_forward.1} parent=1 // pred_check
      _
    $region35: #{rnn_forward.1} parent=1 // pred_check_branch
      %35 = sbr.rel (0) target = $region37
    $region36: #{rnn_forward.1} parent=1 // pred_region
      _
    $region37: #{rnn_forward.1} parent=1 // pred_fallthru
      _
    %v37 = vlaneseq
    %v38 = vand.u32 %v37, 127
    %v39 = vld [vmem:[%s0] sm:$0xff]
    %v40 = vld [vmem:[%s0 + $0x8] sm:$0xff]
    %41 = vset.pattern.permute.xlu0 0
    %42 = vperm.xlu0 %41, %v39
    %v43 = vpop.permute.xlu0 %42
    %44 = vset.pattern.permute.xlu0 0
    %45 = vperm.xlu0 %44, %v40
    %v46 = vpop.permute.xlu0 %45
    %vm47 = vcmp.eq.s32.totalorder %v38, %v43
    %vm48 = vcmp.eq.s32.totalorder %v38, %v46
    %v49 = vsel %vm47, 1, 0
    %v50 = vsel %vm48, 1, 0
    %v51 = vcvt.s32.f32 %v49
    %v52 = vcvt.s32.f32 %v50
    %v53 = vpack.c.bf16 %v52, %v51
    %v54 = vld [vmem:[%s1] sm:$0xf]
    %v55 = vld [vmem:[%s1 + $0x4] sm:$0xf]
    %v56 = vld [vmem:[%s1 + $0x8] sm:$0xf]
    %v57 = vld [vmem:[%s1 + $0xc] sm:$0xf]
    %v58 = vld [vmem:[%s1 + $0x10] sm:$0xf]
    %v59 = vld [vmem:[%s1 + $0x14] sm:$0xf]
    %v60 = vld [vmem:[%s1 + $0x18] sm:$0xf]
    %v61 = vld [vmem:[%s1 + $0x1c] sm:$0xf]
    %v62 = vld [vmem:[%s1 + $0x20] sm:$0xf]
    %v63 = vld [vmem:[%s1 + $0x24] sm:$0xf]
    %v64 = vld [vmem:[%s1 + $0x28] sm:$0xf]
    %v65 = vld [vmem:[%s1 + $0x2c] sm:$0xf]
    %v66 = vld [vmem:[%s1 + $0x30] sm:$0xf]
    %v67 = vld [vmem:[%s1 + $0x34] sm:$0xf]
    %v68 = vld [vmem:[%s1 + $0x38] sm:$0xf]
    %v69 = vld [vmem:[%s1 + $0x3c] sm:$0xf]
    %v86 = vunpack.c.l.b16 %v54
    %v87 = vunpack.c.l.b16 %v55
    %v88 = vunpack.c.l.b16 %v56
    %v89 = vunpack.c.l.b16 %v57
    %v90 = vunpack.c.l.b16 %v58
    %v91 = vunpack.c.l.b16 %v59
    %v92 = vunpack.c.l.b16 %v60
    %v93 = vunpack.c.l.b16 %v61
    %v94 = vunpack.c.l.b16 %v62
    %v95 = vunpack.c.l.b16 %v63
    %v96 = vunpack.c.l.b16 %v64
    %v97 = vunpack.c.l.b16 %v65
    %v98 = vunpack.c.l.b16 %v66
    %v99 = vunpack.c.l.b16 %v67
    %v100 = vunpack.c.l.b16 %v68
    %v101 = vunpack.c.l.b16 %v69
    %v102 = vpack.c.b16 %v87, %v86
    %v103 = vpack.c.b16 %v89, %v88
    %v104 = vpack.c.b16 %v91, %v90
    %v105 = vpack.c.b16 %v93, %v92
    %v106 = vpack.c.b16 %v95, %v94
    %v107 = vpack.c.b16 %v97, %v96
    %v108 = vpack.c.b16 %v99, %v98
    %v109 = vpack.c.b16 %v101, %v100
    %118 = vmatprep.subr.bf16.mxu0 0
    %119 = vmatpush1.bf16.msra.mxu0 %v102
    %120 = vmatprep.subr.bf16.mxu0 0
    %121 = vmatpush1.bf16.msra.mxu0 %v103
    %122 = vmatprep.subr.bf16.mxu0 0
    %123 = vmatpush1.bf16.msra.mxu0 %v104
    %124 = vmatprep.subr.bf16.mxu0 0
    %125 = vmatpush1.bf16.msra.mxu0 %v105
    %126 = vmatprep.subr.bf16.mxu0 0
    %127 = vmatpush1.bf16.msra.mxu0 %v106
    %128 = vmatprep.subr.bf16.mxu0 0
    %129 = vmatpush1.bf16.msra.mxu0 %v107
    %130 = vmatprep.subr.bf16.mxu0 0
    %131 = vmatpush1.bf16.msra.mxu0 %v108
    %132 = vmatprep.subr.bf16.mxu0 0
    %133 = vmatpush1.bf16.msra.mxu0 %v109
    %134 = vmatprep.subr.bf16.mxu0 0
    %135 = vmatpush1.bf16.msra.mxu0 0
    %136 = vmatprep.subr.bf16.mxu0 0
    %137 = vmatpush1.bf16.msra.mxu0 0
    %138 = vmatprep.subr.bf16.mxu0 0
    %139 = vmatpush1.bf16.msra.mxu0 0
    %140 = vmatprep.subr.bf16.mxu0 0
    %141 = vmatpush1.bf16.msra.mxu0 0
    %142 = vmatprep.subr.bf16.mxu0 0
    %143 = vmatpush1.bf16.msra.mxu0 0
    %144 = vmatprep.subr.bf16.mxu0 0
    %145 = vmatpush1.bf16.msra.mxu0 0
    %146 = vmatprep.subr.bf16.mxu0 0
    %147 = vmatpush1.bf16.msra.mxu0 0
    %148 = vmatprep.subr.bf16.mxu0 0
    %149 = vmatpush1.bf16.msra.mxu0 0
    %150 = vmatprep.mubr.bf16.mxu0 0
    %151 = vmatmul.mubr.bf16.gmra.mrb[0].mxu0 %v53
    %v152 = vpop.f32.mrb[0].mxu0
    %v153 = vadd.f32 0.0, %v152
    %v154 = vpop.f32.mrb[0].mxu0
    %v155 = vpop.f32.mrb[0].mxu0
    %v156 = vadd.f32 0.0, %v155
    %v157 = vpop.f32.mrb[0].mxu0
    %158 = vdwg.mxu0
    %v159 = vpack.c.bf16 %v156, %v153
    %vm160 = vcmask 261120
    %161 = vst.msk [vmem:[#allocation2] sm:$0xff] %vm160, %v159
    %v162 = vld [vmem:[#allocation2] sm:$0xff]
    %v163 = vld [vmem:[%s4] sm:$0xf]
    %v164 = vld [vmem:[%s4 + $0x4] sm:$0xf]
    %v165 = vld [vmem:[%s4 + $0x8] sm:$0xf]
    %v166 = vld [vmem:[%s4 + $0xc] sm:$0xf]
    %v167 = vld [vmem:[%s6] sm:$0x1]
    %v169 = vlaneseq
    %v170 = vshrl.u32 %v169, 7
    %v171 = vsub.s32 0, %v170
    %v172 = vrot.slane %v167, %v171
    %v178 = vunpack.c.l.b16 %v163
    %v179 = vunpack.c.l.b16 %v164
    %v180 = vunpack.c.l.b16 %v165
    %v181 = vunpack.c.l.b16 %v166
    %v182 = vpack.c.b16 %v179, %v178
    %v183 = vpack.c.b16 %v181, %v180
    %v187 = vsel %vm160, %v162, 0
    %189 = vmatprep.subr.bf16.mxu0 0
    %190 = vmatpush1.bf16.msra.mxu0 %v182
    %191 = vmatprep.subr.bf16.mxu0 0
    %192 = vmatpush1.bf16.msra.mxu0 %v183
    %193 = vmatprep.subr.bf16.mxu0 0
    %194 = vmatpush1.bf16.msra.mxu0 0
    %195 = vmatprep.subr.bf16.mxu0 0
    %196 = vmatpush1.bf16.msra.mxu0 0
    %197 = vmatprep.subr.bf16.mxu0 0
    %198 = vmatpush1.bf16.msra.mxu0 0
    %199 = vmatprep.subr.bf16.mxu0 0
    %200 = vmatpush1.bf16.msra.mxu0 0
    %201 = vmatprep.subr.bf16.mxu0 0
    %202 = vmatpush1.bf16.msra.mxu0 0
    %203 = vmatprep.subr.bf16.mxu0 0
    %204 = vmatpush1.bf16.msra.mxu0 0
    %205 = vmatprep.subr.bf16.mxu0 0
    %206 = vmatpush1.bf16.msra.mxu0 0
    %207 = vmatprep.subr.bf16.mxu0 0
    %208 = vmatpush1.bf16.msra.mxu0 0
    %209 = vmatprep.subr.bf16.mxu0 0
    %210 = vmatpush1.bf16.msra.mxu0 0
    %211 = vmatprep.subr.bf16.mxu0 0
    %212 = vmatpush1.bf16.msra.mxu0 0
    %213 = vmatprep.subr.bf16.mxu0 0
    %214 = vmatpush1.bf16.msra.mxu0 0
    %215 = vmatprep.subr.bf16.mxu0 0
    %216 = vmatpush1.bf16.msra.mxu0 0
    %217 = vmatprep.subr.bf16.mxu0 0
    %218 = vmatpush1.bf16.msra.mxu0 0
    %219 = vmatprep.subr.bf16.mxu0 0
    %220 = vmatpush1.bf16.msra.mxu0 0
    %221 = vmatprep.mubr.bf16.mxu0 0
    %222 = vmatmul.mubr.bf16.gmra.mrb[0].mxu0 %v187
    %v223 = vpop.f32.mrb[0].mxu0
    %v224 = vadd.f32 %v172, %v223
    %v225 = vpop.f32.mrb[0].mxu0
    %v226 = vpop.f32.mrb[0].mxu0
    %v227 = vadd.f32 %v172, %v226
    %v228 = vpop.f32.mrb[0].mxu0
    %229 = vdwg.mxu0
    %v230 = vpack.c.bf16 %v227, %v224
    %231 = vst [vmem:[#allocation3] sm:$0xff] %v230
    %v232 = vld [vmem:[%s5] sm:$0xf]
    %v233 = vld [vmem:[%s5 + $0x4] sm:$0xf]
    %v234 = vld [vmem:[%s5 + $0x8] sm:$0xf]
    %v235 = vld [vmem:[%s5 + $0xc] sm:$0xf]
    %v236 = vld [vmem:[%s2] sm:$0x3]
    %v237 = vld [vmem:[%s3] sm:$0x3]
    %v238 = vld [vmem:[#allocation3] sm:$0x1]
    %v239 = vunpack.c.l.bf16 %v238
    %v240 = vpack.c.bf16 %v236, %v236
    %v245 = vunpack.c.l.b16 %v232
    %v246 = vunpack.c.l.b16 %v233
    %v247 = vunpack.c.l.b16 %v234
    %v248 = vunpack.c.l.b16 %v235
    %v249 = vpack.c.b16 %v246, %v245
    %v250 = vpack.c.b16 %v248, %v247
    %v254 = vsel %vm160, %v240, 0
    %256 = vmatprep.subr.bf16.mxu0 0
    %257 = vmatpush1.bf16.msra.mxu0 %v249
    %258 = vmatprep.subr.bf16.mxu0 0
    %259 = vmatpush1.bf16.msra.mxu0 %v250
    %260 = vmatprep.subr.bf16.mxu0 0
    %261 = vmatpush1.bf16.msra.mxu0 0
    %262 = vmatprep.subr.bf16.mxu0 0
    %263 = vmatpush1.bf16.msra.mxu0 0
    %264 = vmatprep.subr.bf16.mxu0 0
    %265 = vmatpush1.bf16.msra.mxu0 0
    %266 = vmatprep.subr.bf16.mxu0 0
    %267 = vmatpush1.bf16.msra.mxu0 0
    %268 = vmatprep.subr.bf16.mxu0 0
    %269 = vmatpush1.bf16.msra.mxu0 0
    %270 = vmatprep.subr.bf16.mxu0 0
    %271 = vmatpush1.bf16.msra.mxu0 0
    %272 = vmatprep.subr.bf16.mxu0 0
    %273 = vmatpush1.bf16.msra.mxu0 0
    %274 = vmatprep.subr.bf16.mxu0 0
    %275 = vmatpush1.bf16.msra.mxu0 0
    %276 = vmatprep.subr.bf16.mxu0 0
    %277 = vmatpush1.bf16.msra.mxu0 0
    %278 = vmatprep.subr.bf16.mxu0 0
    %279 = vmatpush1.bf16.msra.mxu0 0
    %280 = vmatprep.subr.bf16.mxu0 0
    %281 = vmatpush1.bf16.msra.mxu0 0
    %282 = vmatprep.subr.bf16.mxu0 0
    %283 = vmatpush1.bf16.msra.mxu0 0
    %284 = vmatprep.subr.bf16.mxu0 0
    %285 = vmatpush1.bf16.msra.mxu0 0
    %286 = vmatprep.subr.bf16.mxu0 0
    %287 = vmatpush1.bf16.msra.mxu0 0
    %288 = vmatprep.mubr.bf16.mxu0 0
    %289 = vmatmul.mubr.bf16.gmra.mrb[0].mxu0 %v254
    %v290 = vpop.f32.mrb[0].mxu0
    %v291 = vadd.f32 0.0, %v290
    %v292 = vpop.f32.mrb[0].mxu0
    %v293 = vpop.f32.mrb[0].mxu0
    %v294 = vpop.f32.mrb[0].mxu0
    %295 = vdwg.mxu0
    %v296 = vadd.f32 %v239, %v291
    %v297 = vxor.u32 %v296, 2147483648
    %v298 = vmul.f32 %v297, 1.442695
    %v299 = vpow.pop %v298
    %v300 = vadd.f32 %v299, 1.0
    %v301 = vrcp.pop %v300
    %v302 = vmul.f32 1.0, %v301
    %v303 = vmul.f32 %v302, 2.0
    %v304 = vsub.f32 %v303, 1.0
    %306 = vrot.lane.b32.xlu0 %v237, 32
    %v307 = vpop.permute.xlu0 %306
    %v309 = vmul.f32 %v302, %v307
    %311 = vrot.lane.b32.xlu0 %v304, 64
    %v312 = vpop.permute.xlu0 %311
    %v314 = vmul.f32 %v302, %v312
    %316 = vrot.lane.b32.xlu0 %v314, 32
    %v317 = vpop.permute.xlu0 %316
    %v319 = vadd.f32 %v309, %v317
    %v320 = vtanh.pop %v319
    %322 = vrot.lane.b32.xlu0 %v320, 64
    %v323 = vpop.permute.xlu0 %322
    %v325 = vmul.f32 %v302, %v323
    %v326 = vpack.c.bf16 %v325, %v325
    %328 = vrot.lane.b32.xlu0 %v326, 32
    %v329 = vpop.permute.xlu0 %328
    %vm331 = vcmask 253952
    %332 = vst.msk [vmem:[#allocation2] sm:$0x1] %vm331, %v329
    %v333 = vld [vmem:[#allocation3] sm:$0x2]
    %v334 = vunpack.c.l.bf16 %v333
    %v336 = vsel %vm160, %v329, 0
    %338 = vmatprep.subr.bf16.mxu0 0
    %339 = vmatpush1.bf16.msra.mxu0 %v249
    %340 = vmatprep.subr.bf16.mxu0 0
    %341 = vmatpush1.bf16.msra.mxu0 %v250
    %342 = vmatprep.subr.bf16.mxu0 0
    %343 = vmatpush1.bf16.msra.mxu0 0
    %344 = vmatprep.subr.bf16.mxu0 0
    %345 = vmatpush1.bf16.msra.mxu0 0
    %346 = vmatprep.subr.bf16.mxu0 0
    %347 = vmatpush1.bf16.msra.mxu0 0
    %348 = vmatprep.subr.bf16.mxu0 0
    %349 = vmatpush1.bf16.msra.mxu0 0
    %350 = vmatprep.subr.bf16.mxu0 0
    %351 = vmatpush1.bf16.msra.mxu0 0
    %352 = vmatprep.subr.bf16.mxu0 0
    %353 = vmatpush1.bf16.msra.mxu0 0
    %354 = vmatprep.subr.bf16.mxu0 0
    %355 = vmatpush1.bf16.msra.mxu0 0
    %356 = vmatprep.subr.bf16.mxu0 0
    %357 = vmatpush1.bf16.msra.mxu0 0
    %358 = vmatprep.subr.bf16.mxu0 0
    %359 = vmatpush1.bf16.msra.mxu0 0
    %360 = vmatprep.subr.bf16.mxu0 0
    %361 = vmatpush1.bf16.msra.mxu0 0
    %362 = vmatprep.subr.bf16.mxu0 0
    %363 = vmatpush1.bf16.msra.mxu0 0
    %364 = vmatprep.subr.bf16.mxu0 0
    %365 = vmatpush1.bf16.msra.mxu0 0
    %366 = vmatprep.subr.bf16.mxu0 0
    %367 = vmatpush1.bf16.msra.mxu0 0
    %368 = vmatprep.subr.bf16.mxu0 0
    %369 = vmatpush1.bf16.msra.mxu0 0
    %370 = vmatprep.mubr.bf16.mxu0 0
    %371 = vmatmul.mubr.bf16.gmra.mrb[0].mxu0 %v336
    %v372 = vpop.f32.mrb[0].mxu0
    %v373 = vadd.f32 0.0, %v372
    %v374 = vpop.f32.mrb[0].mxu0
    %v375 = vpop.f32.mrb[0].mxu0
    %v376 = vpop.f32.mrb[0].mxu0
    %377 = vdwg.mxu0
    %v379 = vrot.slane %v373, 6
    %v381 = vadd.f32 %v334, %v379
    %v382 = vxor.u32 %v381, 2147483648
    %v383 = vmul.f32 %v382, 1.442695
    %v384 = vpow.pop %v383
    %v385 = vadd.f32 %v384, 1.0
    %v386 = vrcp.pop %v385
    %v387 = vmul.f32 1.0, %v386
    %v388 = vmul.f32 %v387, 2.0
    %v389 = vsub.f32 %v388, 1.0
    %v391 = vrot.slane %v319, 6
    %v393 = vmul.f32 %v387, %v391
    %395 = vrot.lane.b32.xlu0 %v389, 64
    %v396 = vpop.permute.xlu0 %395
    %v398 = vmul.f32 %v387, %v396
    %400 = vrot.lane.b32.xlu0 %v398, 32
    %v401 = vpop.permute.xlu0 %400
    %v403 = vadd.f32 %v393, %v401
    %v404 = vtanh.pop %v403
    %406 = vrot.lane.b32.xlu0 %v404, 64
    %v407 = vpop.permute.xlu0 %406
    %v409 = vmul.f32 %v387, %v407
    %v410 = vpack.c.bf16 %v409, %v409
    %412 = vrot.lane.b32.xlu0 %v410, 32
    %v413 = vpop.permute.xlu0 %412
    %vm415 = vcmask 254977
    %416 = vst.msk [vmem:[#allocation2] sm:$0x2] %vm415, %v413
    %v417 = vld [vmem:[#allocation3] sm:$0x4]
    %v418 = vunpack.c.l.bf16 %v417
    %v419 = vrot.slane %v410, 1
    %420 = vrot.lane.b32.xlu0 %v419, 32
    %v421 = vpop.permute.xlu0 %420
    %v423 = vsel %vm160, %v421, 0
    %425 = vmatprep.subr.bf16.mxu0 0
    %426 = vmatpush1.bf16.msra.mxu0 %v249
    %427 = vmatprep.subr.bf16.mxu0 0
    %428 = vmatpush1.bf16.msra.mxu0 %v250
    %429 = vmatprep.subr.bf16.mxu0 0
    %430 = vmatpush1.bf16.msra.mxu0 0
    %431 = vmatprep.subr.bf16.mxu0 0
    %432 = vmatpush1.bf16.msra.mxu0 0
    %433 = vmatprep.subr.bf16.mxu0 0
    %434 = vmatpush1.bf16.msra.mxu0 0
    %435 = vmatprep.subr.bf16.mxu0 0
    %436 = vmatpush1.bf16.msra.mxu0 0
    %437 = vmatprep.subr.bf16.mxu0 0
    %438 = vmatpush1.bf16.msra.mxu0 0
    %439 = vmatprep.subr.bf16.mxu0 0
    %440 = vmatpush1.bf16.msra.mxu0 0
    %441 = vmatprep.subr.bf16.mxu0 0
    %442 = vmatpush1.bf16.msra.mxu0 0
    %443 = vmatprep.subr.bf16.mxu0 0
    %444 = vmatpush1.bf16.msra.mxu0 0
    %445 = vmatprep.subr.bf16.mxu0 0
    %446 = vmatpush1.bf16.msra.mxu0 0
    %447 = vmatprep.subr.bf16.mxu0 0
    %448 = vmatpush1.bf16.msra.mxu0 0
    %449 = vmatprep.subr.bf16.mxu0 0
    %450 = vmatpush1.bf16.msra.mxu0 0
    %451 = vmatprep.subr.bf16.mxu0 0
    %452 = vmatpush1.bf16.msra.mxu0 0
    %453 = vmatprep.subr.bf16.mxu0 0
    %454 = vmatpush1.bf16.msra.mxu0 0
    %455 = vmatprep.subr.bf16.mxu0 0
    %456 = vmatpush1.bf16.msra.mxu0 0
    %457 = vmatprep.mubr.bf16.mxu0 0
    %458 = vmatmul.mubr.bf16.gmra.mrb[0].mxu0 %v423
    %v459 = vpop.f32.mrb[0].mxu0
    %v460 = vadd.f32 0.0, %v459
    %v461 = vpop.f32.mrb[0].mxu0
    %v462 = vpop.f32.mrb[0].mxu0
    %v463 = vpop.f32.mrb[0].mxu0
    %464 = vdwg.mxu0
    %v466 = vrot.slane %v460, 4
    %v468 = vadd.f32 %v418, %v466
    %v469 = vxor.u32 %v468, 2147483648
    %v470 = vmul.f32 %v469, 1.442695
    %v471 = vpow.pop %v470
    %v472 = vadd.f32 %v471, 1.0
    %v473 = vrcp.pop %v472
    %v474 = vmul.f32 1.0, %v473
    %v475 = vmul.f32 %v474, 2.0
    %v476 = vsub.f32 %v475, 1.0
    %v478 = vrot.slane %v403, 6
    %v480 = vmul.f32 %v474, %v478
    %482 = vrot.lane.b32.xlu0 %v476, 64
    %v483 = vpop.permute.xlu0 %482
    %v485 = vmul.f32 %v474, %v483
    %487 = vrot.lane.b32.xlu0 %v485, 32
    %v488 = vpop.permute.xlu0 %487
    %v490 = vadd.f32 %v480, %v488
    %v491 = vtanh.pop %v490
    %493 = vrot.lane.b32.xlu0 %v491, 64
    %v494 = vpop.permute.xlu0 %493
    %v496 = vmul.f32 %v474, %v494
    %v497 = vpack.c.bf16 %v496, %v496
    %499 = vrot.lane.b32.xlu0 %v497, 32
    %v500 = vpop.permute.xlu0 %499
    %vm502 = vcmask 256002
    %503 = vst.msk [vmem:[#allocation2] sm:$0x4] %vm502, %v500
    %v504 = vld [vmem:[#allocation3] sm:$0x8]
    %v505 = vunpack.c.l.bf16 %v504
    %v506 = vrot.slane %v497, 2
    %507 = vrot.lane.b32.xlu0 %v506, 32
    %v508 = vpop.permute.xlu0 %507
    %v510 = vsel %vm160, %v508, 0
    %512 = vmatprep.subr.bf16.mxu0 0
    %513 = vmatpush1.bf16.msra.mxu0 %v249
    %514 = vmatprep.subr.bf16.mxu0 0
    %515 = vmatpush1.bf16.msra.mxu0 %v250
    %516 = vmatprep.subr.bf16.mxu0 0
    %517 = vmatpush1.bf16.msra.mxu0 0
    %518 = vmatprep.subr.bf16.mxu0 0
    %519 = vmatpush1.bf16.msra.mxu0 0
    %520 = vmatprep.subr.bf16.mxu0 0
    %521 = vmatpush1.bf16.msra.mxu0 0
    %522 = vmatprep.subr.bf16.mxu0 0
    %523 = vmatpush1.bf16.msra.mxu0 0
    %524 = vmatprep.subr.bf16.mxu0 0
    %525 = vmatpush1.bf16.msra.mxu0 0
    %526 = vmatprep.subr.bf16.mxu0 0
    %527 = vmatpush1.bf16.msra.mxu0 0
    %528 = vmatprep.subr.bf16.mxu0 0
    %529 = vmatpush1.bf16.msra.mxu0 0
    %530 = vmatprep.subr.bf16.mxu0 0
    %531 = vmatpush1.bf16.msra.mxu0 0
    %532 = vmatprep.subr.bf16.mxu0 0
    %533 = vmatpush1.bf16.msra.mxu0 0
    %534 = vmatprep.subr.bf16.mxu0 0
    %535 = vmatpush1.bf16.msra.mxu0 0
    %536 = vmatprep.subr.bf16.mxu0 0
    %537 = vmatpush1.bf16.msra.mxu0 0
    %538 = vmatprep.subr.bf16.mxu0 0
    %539 = vmatpush1.bf16.msra.mxu0 0
    %540 = vmatprep.subr.bf16.mxu0 0
    %541 = vmatpush1.bf16.msra.mxu0 0
    %542 = vmatprep.subr.bf16.mxu0 0
    %543 = vmatpush1.bf16.msra.mxu0 0
    %544 = vmatprep.mubr.bf16.mxu0 0
    %545 = vmatmul.mubr.bf16.gmra.mrb[0].mxu0 %v510
    %v546 = vpop.f32.mrb[0].mxu0
    %v547 = vadd.f32 0.0, %v546
    %v548 = vpop.f32.mrb[0].mxu0
    %v549 = vpop.f32.mrb[0].mxu0
    %v550 = vpop.f32.mrb[0].mxu0
    %551 = vdwg.mxu0
    %v553 = vrot.slane %v547, 2
    %v555 = vadd.f32 %v505, %v553
    %v556 = vxor.u32 %v555, 2147483648
    %v557 = vmul.f32 %v556, 1.442695
    %v558 = vpow.pop %v557
    %v559 = vadd.f32 %v558, 1.0
    %v560 = vrcp.pop %v559
    %v561 = vmul.f32 1.0, %v560
    %v562 = vmul.f32 %v561, 2.0
    %v563 = vsub.f32 %v562, 1.0
    %v565 = vrot.slane %v490, 6
    %v567 = vmul.f32 %v561, %v565
    %569 = vrot.lane.b32.xlu0 %v563, 64
    %v570 = vpop.permute.xlu0 %569
    %v572 = vmul.f32 %v561, %v570
    %574 = vrot.lane.b32.xlu0 %v572, 32
    %v575 = vpop.permute.xlu0 %574
    %v577 = vadd.f32 %v567, %v575
    %v578 = vtanh.pop %v577
    %580 = vrot.lane.b32.xlu0 %v578, 64
    %v581 = vpop.permute.xlu0 %580
    %v583 = vmul.f32 %v561, %v581
    %v584 = vpack.c.bf16 %v583, %v583
    %586 = vrot.lane.b32.xlu0 %v584, 32
    %v587 = vpop.permute.xlu0 %586
    %vm589 = vcmask 257027
    %590 = vst.msk [vmem:[#allocation2] sm:$0x8] %vm589, %v587
    %v591 = vld [vmem:[#allocation3] sm:$0x10]
    %v593 = vrot.slane %v591, 4
    %v595 = vunpack.c.l.bf16 %v593
    %v596 = vrot.slane %v584, 3
    %597 = vrot.lane.b32.xlu0 %v596, 32
    %v598 = vpop.permute.xlu0 %597
    %v600 = vsel %vm160, %v598, 0
    %602 = vmatprep.subr.bf16.mxu0 0
    %603 = vmatpush1.bf16.msra.mxu0 %v249
    %604 = vmatprep.subr.bf16.mxu0 0
    %605 = vmatpush1.bf16.msra.mxu0 %v250
    %606 = vmatprep.subr.bf16.mxu0 0
    %607 = vmatpush1.bf16.msra.mxu0 0
    %608 = vmatprep.subr.bf16.mxu0 0
    %609 = vmatpush1.bf16.msra.mxu0 0
    %610 = vmatprep.subr.bf16.mxu0 0
    %611 = vmatpush1.bf16.msra.mxu0 0
    %612 = vmatprep.subr.bf16.mxu0 0
    %613 = vmatpush1.bf16.msra.mxu0 0
    %614 = vmatprep.subr.bf16.mxu0 0
    %615 = vmatpush1.bf16.msra.mxu0 0
    %616 = vmatprep.subr.bf16.mxu0 0
    %617 = vmatpush1.bf16.msra.mxu0 0
    %618 = vmatprep.subr.bf16.mxu0 0
    %619 = vmatpush1.bf16.msra.mxu0 0
    %620 = vmatprep.subr.bf16.mxu0 0
    %621 = vmatpush1.bf16.msra.mxu0 0
    %622 = vmatprep.subr.bf16.mxu0 0
    %623 = vmatpush1.bf16.msra.mxu0 0
    %624 = vmatprep.subr.bf16.mxu0 0
    %625 = vmatpush1.bf16.msra.mxu0 0
    %626 = vmatprep.subr.bf16.mxu0 0
    %627 = vmatpush1.bf16.msra.mxu0 0
    %628 = vmatprep.subr.bf16.mxu0 0
    %629 = vmatpush1.bf16.msra.mxu0 0
    %630 = vmatprep.subr.bf16.mxu0 0
    %631 = vmatpush1.bf16.msra.mxu0 0
    %632 = vmatprep.subr.bf16.mxu0 0
    %633 = vmatpush1.bf16.msra.mxu0 0
    %634 = vmatprep.mubr.bf16.mxu0 0
    %635 = vmatmul.mubr.bf16.gmra.mrb[0].mxu0 %v600
    %v636 = vpop.f32.mrb[0].mxu0
    %v637 = vadd.f32 0.0, %v636
    %v638 = vpop.f32.mrb[0].mxu0
    %v639 = vpop.f32.mrb[0].mxu0
    %v640 = vpop.f32.mrb[0].mxu0
    %641 = vdwg.mxu0
    %v642 = vadd.f32 %v595, %v637
    %v643 = vxor.u32 %v642, 2147483648
    %v644 = vmul.f32 %v643, 1.442695
    %v645 = vpow.pop %v644
    %v646 = vadd.f32 %v645, 1.0
    %v647 = vrcp.pop %v646
    %v648 = vmul.f32 1.0, %v647
    %v649 = vmul.f32 %v648, 2.0
    %v650 = vsub.f32 %v649, 1.0
    %v652 = vrot.slane %v577, 6
    %v654 = vmul.f32 %v648, %v652
    %656 = vrot.lane.b32.xlu0 %v650, 64
    %v657 = vpop.permute.xlu0 %656
    %v659 = vmul.f32 %v648, %v657
    %661 = vrot.lane.b32.xlu0 %v659, 32
    %v662 = vpop.permute.xlu0 %661
    %v664 = vadd.f32 %v654, %v662
    %v665 = vtanh.pop %v664
    %667 = vrot.lane.b32.xlu0 %v665, 64
    %v668 = vpop.permute.xlu0 %667
    %v670 = vmul.f32 %v648, %v668
    %v671 = vpack.c.bf16 %v670, %v670
    %v673 = vrot.slane %v671, 4
    %674 = vrot.lane.b32.xlu0 %v673, 32
    %v675 = vpop.permute.xlu0 %674
    %vm677 = vcmask 258052
    %678 = vst.msk [vmem:[#allocation2] sm:$0x10] %vm677, %v675
    %v679 = vld [vmem:[#allocation3] sm:$0x20]
    %v681 = vrot.slane %v679, 4
    %v683 = vunpack.c.l.bf16 %v681
    %684 = vrot.lane.b32.xlu0 %v671, 32
    %v685 = vpop.permute.xlu0 %684
    %v687 = vsel %vm160, %v685, 0
    %689 = vmatprep.subr.bf16.mxu0 0
    %690 = vmatpush1.bf16.msra.mxu0 %v249
    %691 = vmatprep.subr.bf16.mxu0 0
    %692 = vmatpush1.bf16.msra.mxu0 %v250
    %693 = vmatprep.subr.bf16.mxu0 0
    %694 = vmatpush1.bf16.msra.mxu0 0
    %695 = vmatprep.subr.bf16.mxu0 0
    %696 = vmatpush1.bf16.msra.mxu0 0
    %697 = vmatprep.subr.bf16.mxu0 0
    %698 = vmatpush1.bf16.msra.mxu0 0
    %699 = vmatprep.subr.bf16.mxu0 0
    %700 = vmatpush1.bf16.msra.mxu0 0
    %701 = vmatprep.subr.bf16.mxu0 0
    %702 = vmatpush1.bf16.msra.mxu0 0
    %703 = vmatprep.subr.bf16.mxu0 0
    %704 = vmatpush1.bf16.msra.mxu0 0
    %705 = vmatprep.subr.bf16.mxu0 0
    %706 = vmatpush1.bf16.msra.mxu0 0
    %707 = vmatprep.subr.bf16.mxu0 0
    %708 = vmatpush1.bf16.msra.mxu0 0
    %709 = vmatprep.subr.bf16.mxu0 0
    %710 = vmatpush1.bf16.msra.mxu0 0
    %711 = vmatprep.subr.bf16.mxu0 0
    %712 = vmatpush1.bf16.msra.mxu0 0
    %713 = vmatprep.subr.bf16.mxu0 0
    %714 = vmatpush1.bf16.msra.mxu0 0
    %715 = vmatprep.subr.bf16.mxu0 0
    %716 = vmatpush1.bf16.msra.mxu0 0
    %717 = vmatprep.subr.bf16.mxu0 0
    %718 = vmatpush1.bf16.msra.mxu0 0
    %719 = vmatprep.subr.bf16.mxu0 0
    %720 = vmatpush1.bf16.msra.mxu0 0
    %721 = vmatprep.mubr.bf16.mxu0 0
    %722 = vmatmul.mubr.bf16.gmra.mrb[0].mxu0 %v687
    %v723 = vpop.f32.mrb[0].mxu0
    %v724 = vadd.f32 0.0, %v723
    %v725 = vpop.f32.mrb[0].mxu0
    %v726 = vpop.f32.mrb[0].mxu0
    %v727 = vpop.f32.mrb[0].mxu0
    %728 = vdwg.mxu0
    %v730 = vrot.slane %v724, 6
    %v732 = vadd.f32 %v683, %v730
    %v733 = vxor.u32 %v732, 2147483648
    %v734 = vmul.f32 %v733, 1.442695
    %v735 = vpow.pop %v734
    %v736 = vadd.f32 %v735, 1.0
    %v737 = vrcp.pop %v736
    %v738 = vmul.f32 1.0, %v737
    %v739 = vmul.f32 %v738, 2.0
    %v740 = vsub.f32 %v739, 1.0
    %v742 = vrot.slane %v664, 6
    %v744 = vmul.f32 %v738, %v742
    %746 = vrot.lane.b32.xlu0 %v740, 64
    %v747 = vpop.permute.xlu0 %746
    %v749 = vmul.f32 %v738, %v747
    %751 = vrot.lane.b32.xlu0 %v749, 32
    %v752 = vpop.permute.xlu0 %751
    %v754 = vadd.f32 %v744, %v752
    %v755 = vtanh.pop %v754
    %757 = vrot.lane.b32.xlu0 %v755, 64
    %v758 = vpop.permute.xlu0 %757
    %v760 = vmul.f32 %v738, %v758
    %v761 = vpack.c.bf16 %v760, %v760
    %v763 = vrot.slane %v761, 4
    %764 = vrot.lane.b32.xlu0 %v763, 32
    %v765 = vpop.permute.xlu0 %764
    %vm767 = vcmask 259077
    %768 = vst.msk [vmem:[#allocation2] sm:$0x20] %vm767, %v765
    %v769 = vld [vmem:[#allocation3] sm:$0x40]
    %v771 = vrot.slane %v769, 4
    %v773 = vunpack.c.l.bf16 %v771
    %v774 = vrot.slane %v761, 1
    %775 = vrot.lane.b32.xlu0 %v774, 32
    %v776 = vpop.permute.xlu0 %775
    %v778 = vsel %vm160, %v776, 0
    %780 = vmatprep.subr.bf16.mxu0 0
    %781 = vmatpush1.bf16.msra.mxu0 %v249
    %782 = vmatprep.subr.bf16.mxu0 0
    %783 = vmatpush1.bf16.msra.mxu0 %v250
    %784 = vmatprep.subr.bf16.mxu0 0
    %785 = vmatpush1.bf16.msra.mxu0 0
    %786 = vmatprep.subr.bf16.mxu0 0
    %787 = vmatpush1.bf16.msra.mxu0 0
    %788 = vmatprep.subr.bf16.mxu0 0
    %789 = vmatpush1.bf16.msra.mxu0 0
    %790 = vmatprep.subr.bf16.mxu0 0
    %791 = vmatpush1.bf16.msra.mxu0 0
    %792 = vmatprep.subr.bf16.mxu0 0
    %793 = vmatpush1.bf16.msra.mxu0 0
    %794 = vmatprep.subr.bf16.mxu0 0
    %795 = vmatpush1.bf16.msra.mxu0 0
    %796 = vmatprep.subr.bf16.mxu0 0
    %797 = vmatpush1.bf16.msra.mxu0 0
    %798 = vmatprep.subr.bf16.mxu0 0
    %799 = vmatpush1.bf16.msra.mxu0 0
    %800 = vmatprep.subr.bf16.mxu0 0
    %801 = vmatpush1.bf16.msra.mxu0 0
    %802 = vmatprep.subr.bf16.mxu0 0
    %803 = vmatpush1.bf16.msra.mxu0 0
    %804 = vmatprep.subr.bf16.mxu0 0
    %805 = vmatpush1.bf16.msra.mxu0 0
    %806 = vmatprep.subr.bf16.mxu0 0
    %807 = vmatpush1.bf16.msra.mxu0 0
    %808 = vmatprep.subr.bf16.mxu0 0
    %809 = vmatpush1.bf16.msra.mxu0 0
    %810 = vmatprep.subr.bf16.mxu0 0
    %811 = vmatpush1.bf16.msra.mxu0 0
    %812 = vmatprep.mubr.bf16.mxu0 0
    %813 = vmatmul.mubr.bf16.gmra.mrb[0].mxu0 %v778
    %v814 = vpop.f32.mrb[0].mxu0
    %v815 = vadd.f32 0.0, %v814
    %v816 = vpop.f32.mrb[0].mxu0
    %v817 = vpop.f32.mrb[0].mxu0
    %v818 = vpop.f32.mrb[0].mxu0
    %819 = vdwg.mxu0
    %v821 = vrot.slane %v815, 4
    %v823 = vadd.f32 %v773, %v821
    %v824 = vxor.u32 %v823, 2147483648
    %v825 = vmul.f32 %v824, 1.442695
    %v826 = vpow.pop %v825
    %v827 = vadd.f32 %v826, 1.0
    %v828 = vrcp.pop %v827
    %v829 = vmul.f32 1.0, %v828
    %v830 = vmul.f32 %v829, 2.0
    %v831 = vsub.f32 %v830, 1.0
    %v833 = vrot.slane %v754, 6
    %v835 = vmul.f32 %v829, %v833
    %837 = vrot.lane.b32.xlu0 %v831, 64
    %v838 = vpop.permute.xlu0 %837
    %v840 = vmul.f32 %v829, %v838
    %842 = vrot.lane.b32.xlu0 %v840, 32
    %v843 = vpop.permute.xlu0 %842
    %v845 = vadd.f32 %v835, %v843
    %v846 = vtanh.pop %v845
    %848 = vrot.lane.b32.xlu0 %v846, 64
    %v849 = vpop.permute.xlu0 %848
    %v851 = vmul.f32 %v829, %v849
    %v852 = vpack.c.bf16 %v851, %v851
    %v854 = vrot.slane %v852, 4
    %855 = vrot.lane.b32.xlu0 %v854, 32
    %v856 = vpop.permute.xlu0 %855
    %vm858 = vcmask 260102
    %859 = vst.msk [vmem:[#allocation2] sm:$0x40] %vm858, %v856
    %v860 = vld [vmem:[#allocation3] sm:$0x80]
    %v862 = vrot.slane %v860, 4
    %v864 = vunpack.c.l.bf16 %v862
    %v865 = vrot.slane %v852, 2
    %866 = vrot.lane.b32.xlu0 %v865, 32
    %v867 = vpop.permute.xlu0 %866
    %v869 = vsel %vm160, %v867, 0
    %871 = vmatprep.subr.bf16.mxu0 0
    %872 = vmatpush1.bf16.msra.mxu0 %v249
    %873 = vmatprep.subr.bf16.mxu0 0
    %874 = vmatpush1.bf16.msra.mxu0 %v250
    %875 = vmatprep.subr.bf16.mxu0 0
    %876 = vmatpush1.bf16.msra.mxu0 0
    %877 = vmatprep.subr.bf16.mxu0 0
    %878 = vmatpush1.bf16.msra.mxu0 0
    %879 = vmatprep.subr.bf16.mxu0 0
    %880 = vmatpush1.bf16.msra.mxu0 0
    %881 = vmatprep.subr.bf16.mxu0 0
    %882 = vmatpush1.bf16.msra.mxu0 0
    %883 = vmatprep.subr.bf16.mxu0 0
    %884 = vmatpush1.bf16.msra.mxu0 0
    %885 = vmatprep.subr.bf16.mxu0 0
    %886 = vmatpush1.bf16.msra.mxu0 0
    %887 = vmatprep.subr.bf16.mxu0 0
    %888 = vmatpush1.bf16.msra.mxu0 0
    %889 = vmatprep.subr.bf16.mxu0 0
    %890 = vmatpush1.bf16.msra.mxu0 0
    %891 = vmatprep.subr.bf16.mxu0 0
    %892 = vmatpush1.bf16.msra.mxu0 0
    %893 = vmatprep.subr.bf16.mxu0 0
    %894 = vmatpush1.bf16.msra.mxu0 0
    %895 = vmatprep.subr.bf16.mxu0 0
    %896 = vmatpush1.bf16.msra.mxu0 0
    %897 = vmatprep.subr.bf16.mxu0 0
    %898 = vmatpush1.bf16.msra.mxu0 0
    %899 = vmatprep.subr.bf16.mxu0 0
    %900 = vmatpush1.bf16.msra.mxu0 0
    %901 = vmatprep.subr.bf16.mxu0 0
    %902 = vmatpush1.bf16.msra.mxu0 0
    %903 = vmatprep.mubr.bf16.mxu0 0
    %904 = vmatmul.mubr.bf16.gmra.mrb[0].mxu0 %v869
    %v905 = vpop.f32.mrb[0].mxu0
    %v906 = vadd.f32 0.0, %v905
    %v907 = vpop.f32.mrb[0].mxu0
    %v908 = vpop.f32.mrb[0].mxu0
    %v909 = vpop.f32.mrb[0].mxu0
    %910 = vdwg.mxu0
    %v912 = vrot.slane %v906, 2
    %v914 = vadd.f32 %v864, %v912
    %v915 = vxor.u32 %v914, 2147483648
    %v916 = vmul.f32 %v915, 1.442695
    %v917 = vpow.pop %v916
    %v918 = vadd.f32 %v917, 1.0
    %v919 = vrcp.pop %v918
    %v920 = vmul.f32 1.0, %v919
    %v921 = vmul.f32 %v920, 2.0
    %v922 = vsub.f32 %v921, 1.0
    %v924 = vrot.slane %v845, 6
    %v926 = vmul.f32 %v920, %v924
    %928 = vrot.lane.b32.xlu0 %v922, 64
    %v929 = vpop.permute.xlu0 %928
    %v931 = vmul.f32 %v920, %v929
    %933 = vrot.lane.b32.xlu0 %v931, 32
    %v934 = vpop.permute.xlu0 %933
    %v936 = vadd.f32 %v926, %v934
    %v937 = vtanh.pop %v936
    %939 = vrot.lane.b32.xlu0 %v937, 64
    %v940 = vpop.permute.xlu0 %939
    %v942 = vmul.f32 %v920, %v940
    %v943 = vpack.c.bf16 %v942, %v942
    %v945 = vrot.slane %v943, 4
    %946 = vrot.lane.b32.xlu0 %v945, 32
    %v947 = vpop.permute.xlu0 %946
    %vm949 = vcmask 261127
    %950 = vst.msk [vmem:[#allocation2] sm:$0x80] %vm949, %v947
    %952 = vrot.lane.b32.xlu0 %v942, 32
    %v953 = vpop.permute.xlu0 %952
    %vm955 = vcmask 261126
    %956 = vst.msk [vmem:[%s10 - $0x6] sm:$0xc0] %vm955, %v953
    %958 = vrot.lane.b32.xlu0 %v936, 96
    %v959 = vpop.permute.xlu0 %958
    %961 = vst.msk [vmem:[%s11 - $0x6] sm:$0xc0] %vm955, %v959
    %v962 = vld [vmem:[#allocation2] sm:$0xff]
    %s963 = scalar_lea.vmem %s4, 16
    %v964 = vld [vmem:[%s963] sm:$0xf]
    %v965 = vld [vmem:[%s963 + $0x4] sm:$0xf]
    %v966 = vld [vmem:[%s963 + $0x8] sm:$0xf]
    %v967 = vld [vmem:[%s963 + $0xc] sm:$0xf]
    %s968 = scalar_lea.vmem %s6, 1
    %v969 = vld [vmem:[%s968] sm:$0x1]
    %v971 = vlaneseq
    %v972 = vshrl.u32 %v971, 7
    %v973 = vsub.s32 0, %v972
    %v974 = vrot.slane %v969, %v973
    %v980 = vunpack.c.l.b16 %v964
    %v981 = vunpack.c.l.b16 %v965
    %v982 = vunpack.c.l.b16 %v966
    %v983 = vunpack.c.l.b16 %v967
    %v984 = vpack.c.b16 %v981, %v980
    %v985 = vpack.c.b16 %v983, %v982
    %v989 = vsel %vm160, %v962, 0
    %991 = vmatprep.subr.bf16.mxu0 0
    %992 = vmatpush1.bf16.msra.mxu0 %v984
    %993 = vmatprep.subr.bf16.mxu0 0
    %994 = vmatpush1.bf16.msra.mxu0 %v985
    %995 = vmatprep.subr.bf16.mxu0 0
    %996 = vmatpush1.bf16.msra.mxu0 0
    %997 = vmatprep.subr.bf16.mxu0 0
    %998 = vmatpush1.bf16.msra.mxu0 0
    %999 = vmatprep.subr.bf16.mxu0 0
    %1000 = vmatpush1.bf16.msra.mxu0 0
    %1001 = vmatprep.subr.bf16.mxu0 0
    %1002 = vmatpush1.bf16.msra.mxu0 0
    %1003 = vmatprep.subr.bf16.mxu0 0
    %1004 = vmatpush1.bf16.msra.mxu0 0
    %1005 = vmatprep.subr.bf16.mxu0 0
    %1006 = vmatpush1.bf16.msra.mxu0 0
    %1007 = vmatprep.subr.bf16.mxu0 0
    %1008 = vmatpush1.bf16.msra.mxu0 0
    %1009 = vmatprep.subr.bf16.mxu0 0
    %1010 = vmatpush1.bf16.msra.mxu0 0
    %1011 = vmatprep.subr.bf16.mxu0 0
    %1012 = vmatpush1.bf16.msra.mxu0 0
    %1013 = vmatprep.subr.bf16.mxu0 0
    %1014 = vmatpush1.bf16.msra.mxu0 0
    %1015 = vmatprep.subr.bf16.mxu0 0
    %1016 = vmatpush1.bf16.msra.mxu0 0
    %1017 = vmatprep.subr.bf16.mxu0 0
    %1018 = vmatpush1.bf16.msra.mxu0 0
    %1019 = vmatprep.subr.bf16.mxu0 0
    %1020 = vmatpush1.bf16.msra.mxu0 0
    %1021 = vmatprep.subr.bf16.mxu0 0
    %1022 = vmatpush1.bf16.msra.mxu0 0
    %1023 = vmatprep.mubr.bf16.mxu0 0
    %1024 = vmatmul.mubr.bf16.gmra.mrb[0].mxu0 %v989
    %v1025 = vpop.f32.mrb[0].mxu0
    %v1026 = vadd.f32 %v974, %v1025
    %v1027 = vpop.f32.mrb[0].mxu0
    %v1028 = vpop.f32.mrb[0].mxu0
    %v1029 = vadd.f32 %v974, %v1028
    %v1030 = vpop.f32.mrb[0].mxu0
    %1031 = vdwg.mxu0
    %v1032 = vpack.c.bf16 %v1029, %v1026
    %1033 = vst [vmem:[#allocation3] sm:$0xff] %v1032
    %s1034 = scalar_lea.vmem %s5, 16
    %v1035 = vld [vmem:[%s1034] sm:$0xf]
    %v1036 = vld [vmem:[%s1034 + $0x4] sm:$0xf]
    %v1037 = vld [vmem:[%s1034 + $0x8] sm:$0xf]
    %v1038 = vld [vmem:[%s1034 + $0xc] sm:$0xf]
    %s1039 = scalar_lea.vmem %s2, 2
    %v1040 = vld [vmem:[%s1039] sm:$0x3]
    %s1041 = scalar_lea.vmem %s3, 2
    %v1042 = vld [vmem:[%s1041] sm:$0x3]
    %v1043 = vld [vmem:[#allocation3] sm:$0x1]
    %v1044 = vunpack.c.l.bf16 %v1043
    %v1045 = vpack.c.bf16 %v1040, %v1040
    %v1050 = vunpack.c.l.b16 %v1035
    %v1051 = vunpack.c.l.b16 %v1036
    %v1052 = vunpack.c.l.b16 %v1037
    %v1053 = vunpack.c.l.b16 %v1038
    %v1054 = vpack.c.b16 %v1051, %v1050
    %v1055 = vpack.c.b16 %v1053, %v1052
    %v1059 = vsel %vm160, %v1045, 0
    %1061 = vmatprep.subr.bf16.mxu0 0
    %1062 = vmatpush1.bf16.msra.mxu0 %v1054
    %1063 = vmatprep.subr.bf16.mxu0 0
    %1064 = vmatpush1.bf16.msra.mxu0 %v1055
    %1065 = vmatprep.subr.bf16.mxu0 0
    %1066 = vmatpush1.bf16.msra.mxu0 0
    %1067 = vmatprep.subr.bf16.mxu0 0
    %1068 = vmatpush1.bf16.msra.mxu0 0
    %1069 = vmatprep.subr.bf16.mxu0 0
    %1070 = vmatpush1.bf16.msra.mxu0 0
    %1071 = vmatprep.subr.bf16.mxu0 0
    %1072 = vmatpush1.bf16.msra.mxu0 0
    %1073 = vmatprep.subr.bf16.mxu0 0
    %1074 = vmatpush1.bf16.msra.mxu0 0
    %1075 = vmatprep.subr.bf16.mxu0 0
    %1076 = vmatpush1.bf16.msra.mxu0 0
    %1077 = vmatprep.subr.bf16.mxu0 0
    %1078 = vmatpush1.bf16.msra.mxu0 0
    %1079 = vmatprep.subr.bf16.mxu0 0
    %1080 = vmatpush1.bf16.msra.mxu0 0
    %1081 = vmatprep.subr.bf16.mxu0 0
    %1082 = vmatpush1.bf16.msra.mxu0 0
    %1083 = vmatprep.subr.bf16.mxu0 0
    %1084 = vmatpush1.bf16.msra.mxu0 0
    %1085 = vmatprep.subr.bf16.mxu0 0
    %1086 = vmatpush1.bf16.msra.mxu0 0
    %1087 = vmatprep.subr.bf16.mxu0 0
    %1088 = vmatpush1.bf16.msra.mxu0 0
    %1089 = vmatprep.subr.bf16.mxu0 0
    %1090 = vmatpush1.bf16.msra.mxu0 0
    %1091 = vmatprep.subr.bf16.mxu0 0
    %1092 = vmatpush1.bf16.msra.mxu0 0
    %1093 = vmatprep.mubr.bf16.mxu0 0
    %1094 = vmatmul.mubr.bf16.gmra.mrb[0].mxu0 %v1059
    %v1095 = vpop.f32.mrb[0].mxu0
    %v1096 = vadd.f32 0.0, %v1095
    %v1097 = vpop.f32.mrb[0].mxu0
    %v1098 = vpop.f32.mrb[0].mxu0
    %v1099 = vpop.f32.mrb[0].mxu0
    %1100 = vdwg.mxu0
    %v1101 = vadd.f32 %v1044, %v1096
    %v1102 = vxor.u32 %v1101, 2147483648
    %v1103 = vmul.f32 %v1102, 1.442695
    %v1104 = vpow.pop %v1103
    %v1105 = vadd.f32 %v1104, 1.0
    %v1106 = vrcp.pop %v1105
    %v1107 = vmul.f32 1.0, %v1106
    %v1108 = vmul.f32 %v1107, 2.0
    %v1109 = vsub.f32 %v1108, 1.0
    %1111 = vrot.lane.b32.xlu0 %v1042, 32
    %v1112 = vpop.permute.xlu0 %1111
    %v1114 = vmul.f32 %v1107, %v1112
    %1116 = vrot.lane.b32.xlu0 %v1109, 64
    %v1117 = vpop.permute.xlu0 %1116
    %v1119 = vmul.f32 %v1107, %v1117
    %1121 = vrot.lane.b32.xlu0 %v1119, 32
    %v1122 = vpop.permute.xlu0 %1121
    %v1124 = vadd.f32 %v1114, %v1122
    %v1125 = vtanh.pop %v1124
    %1127 = vrot.lane.b32.xlu0 %v1125, 64
    %v1128 = vpop.permute.xlu0 %1127
    %v1130 = vmul.f32 %v1107, %v1128
    %v1131 = vld [vmem:[#allocation3] sm:$0x2]
    %v1132 = vunpack.c.l.bf16 %v1131
    %v1133 = vpack.c.bf16 %v1130, %v1130
    %1135 = vrot.lane.b32.xlu0 %v1133, 32
    %v1136 = vpop.permute.xlu0 %1135
    %v1138 = vsel %vm160, %v1136, 0
    %1140 = vmatprep.subr.bf16.mxu0 0
    %1141 = vmatpush1.bf16.msra.mxu0 %v1054
    %1142 = vmatprep.subr.bf16.mxu0 0
    %1143 = vmatpush1.bf16.msra.mxu0 %v1055
    %1144 = vmatprep.subr.bf16.mxu0 0
    %1145 = vmatpush1.bf16.msra.mxu0 0
    %1146 = vmatprep.subr.bf16.mxu0 0
    %1147 = vmatpush1.bf16.msra.mxu0 0
    %1148 = vmatprep.subr.bf16.mxu0 0
    %1149 = vmatpush1.bf16.msra.mxu0 0
    %1150 = vmatprep.subr.bf16.mxu0 0
    %1151 = vmatpush1.bf16.msra.mxu0 0
    %1152 = vmatprep.subr.bf16.mxu0 0
    %1153 = vmatpush1.bf16.msra.mxu0 0
    %1154 = vmatprep.subr.bf16.mxu0 0
    %1155 = vmatpush1.bf16.msra.mxu0 0
    %1156 = vmatprep.subr.bf16.mxu0 0
    %1157 = vmatpush1.bf16.msra.mxu0 0
    %1158 = vmatprep.subr.bf16.mxu0 0
    %1159 = vmatpush1.bf16.msra.mxu0 0
    %1160 = vmatprep.subr.bf16.mxu0 0
    %1161 = vmatpush1.bf16.msra.mxu0 0
    %1162 = vmatprep.subr.bf16.mxu0 0
    %1163 = vmatpush1.bf16.msra.mxu0 0
    %1164 = vmatprep.subr.bf16.mxu0 0
    %1165 = vmatpush1.bf16.msra.mxu0 0
    %1166 = vmatprep.subr.bf16.mxu0 0
    %1167 = vmatpush1.bf16.msra.mxu0 0
    %1168 = vmatprep.subr.bf16.mxu0 0
    %1169 = vmatpush1.bf16.msra.mxu0 0
    %1170 = vmatprep.subr.bf16.mxu0 0
    %1171 = vmatpush1.bf16.msra.mxu0 0
    %1172 = vmatprep.mubr.bf16.mxu0 0
    %1173 = vmatmul.mubr.bf16.gmra.mrb[0].mxu0 %v1138
    %v1174 = vpop.f32.mrb[0].mxu0
    %v1175 = vadd.f32 0.0, %v1174
    %v1176 = vpop.f32.mrb[0].mxu0
    %v1177 = vpop.f32.mrb[0].mxu0
    %v1178 = vpop.f32.mrb[0].mxu0
    %1179 = vdwg.mxu0
    %v1181 = vrot.slane %v1175, 6
    %v1183 = vadd.f32 %v1132, %v1181
    %v1184 = vxor.u32 %v1183, 2147483648
    %v1185 = vmul.f32 %v1184, 1.442695
    %v1186 = vpow.pop %v1185
    %v1187 = vadd.f32 %v1186, 1.0
    %v1188 = vrcp.pop %v1187
    %v1189 = vmul.f32 1.0, %v1188
    %v1190 = vmul.f32 %v1189, 2.0
    %v1191 = vsub.f32 %v1190, 1.0
    %v1193 = vrot.slane %v1124, 6
    %v1195 = vmul.f32 %v1189, %v1193
    %1197 = vrot.lane.b32.xlu0 %v1191, 64
    %v1198 = vpop.permute.xlu0 %1197
    %v1200 = vmul.f32 %v1189, %v1198
    %1202 = vrot.lane.b32.xlu0 %v1200, 32
    %v1203 = vpop.permute.xlu0 %1202
    %v1205 = vadd.f32 %v1195, %v1203
    %v1206 = vtanh.pop %v1205
    %1208 = vrot.lane.b32.xlu0 %v1206, 64
    %v1209 = vpop.permute.xlu0 %1208
    %v1211 = vmul.f32 %v1189, %v1209
    %v1212 = vld [vmem:[#allocation3] sm:$0x4]
    %v1213 = vunpack.c.l.bf16 %v1212
    %v1214 = vpack.c.bf16 %v1211, %v1211
    %v1216 = vrot.slane %v1214, 1
    %1217 = vrot.lane.b32.xlu0 %v1216, 32
    %v1218 = vpop.permute.xlu0 %1217
    %v1220 = vsel %vm160, %v1218, 0
    %1222 = vmatprep.subr.bf16.mxu0 0
    %1223 = vmatpush1.bf16.msra.mxu0 %v1054
    %1224 = vmatprep.subr.bf16.mxu0 0
    %1225 = vmatpush1.bf16.msra.mxu0 %v1055
    %1226 = vmatprep.subr.bf16.mxu0 0
    %1227 = vmatpush1.bf16.msra.mxu0 0
    %1228 = vmatprep.subr.bf16.mxu0 0
    %1229 = vmatpush1.bf16.msra.mxu0 0
    %1230 = vmatprep.subr.bf16.mxu0 0
    %1231 = vmatpush1.bf16.msra.mxu0 0
    %1232 = vmatprep.subr.bf16.mxu0 0
    %1233 = vmatpush1.bf16.msra.mxu0 0
    %1234 = vmatprep.subr.bf16.mxu0 0
    %1235 = vmatpush1.bf16.msra.mxu0 0
    %1236 = vmatprep.subr.bf16.mxu0 0
    %1237 = vmatpush1.bf16.msra.mxu0 0
    %1238 = vmatprep.subr.bf16.mxu0 0
    %1239 = vmatpush1.bf16.msra.mxu0 0
    %1240 = vmatprep.subr.bf16.mxu0 0
    %1241 = vmatpush1.bf16.msra.mxu0 0
    %1242 = vmatprep.subr.bf16.mxu0 0
    %1243 = vmatpush1.bf16.msra.mxu0 0
    %1244 = vmatprep.subr.bf16.mxu0 0
    %1245 = vmatpush1.bf16.msra.mxu0 0
    %1246 = vmatprep.subr.bf16.mxu0 0
    %1247 = vmatpush1.bf16.msra.mxu0 0
    %1248 = vmatprep.subr.bf16.mxu0 0
    %1249 = vmatpush1.bf16.msra.mxu0 0
    %1250 = vmatprep.subr.bf16.mxu0 0
    %1251 = vmatpush1.bf16.msra.mxu0 0
    %1252 = vmatprep.subr.bf16.mxu0 0
    %1253 = vmatpush1.bf16.msra.mxu0 0
    %1254 = vmatprep.mubr.bf16.mxu0 0
    %1255 = vmatmul.mubr.bf16.gmra.mrb[0].mxu0 %v1220
    %v1256 = vpop.f32.mrb[0].mxu0
    %v1257 = vadd.f32 0.0, %v1256
    %v1258 = vpop.f32.mrb[0].mxu0
    %v1259 = vpop.f32.mrb[0].mxu0
    %v1260 = vpop.f32.mrb[0].mxu0
    %1261 = vdwg.mxu0
    %v1263 = vrot.slane %v1257, 4
    %v1265 = vadd.f32 %v1213, %v1263
    %v1266 = vxor.u32 %v1265, 2147483648
    %v1267 = vmul.f32 %v1266, 1.442695
    %v1268 = vpow.pop %v1267
    %v1269 = vadd.f32 %v1268, 1.0
    %v1270 = vrcp.pop %v1269
    %v1271 = vmul.f32 1.0, %v1270
    %v1272 = vmul.f32 %v1271, 2.0
    %v1273 = vsub.f32 %v1272, 1.0
    %v1275 = vrot.slane %v1205, 6
    %v1277 = vmul.f32 %v1271, %v1275
    %1279 = vrot.lane.b32.xlu0 %v1273, 64
    %v1280 = vpop.permute.xlu0 %1279
    %v1282 = vmul.f32 %v1271, %v1280
    %1284 = vrot.lane.b32.xlu0 %v1282, 32
    %v1285 = vpop.permute.xlu0 %1284
    %v1287 = vadd.f32 %v1277, %v1285
    %v1288 = vtanh.pop %v1287
    %1290 = vrot.lane.b32.xlu0 %v1288, 64
    %v1291 = vpop.permute.xlu0 %1290
    %v1293 = vmul.f32 %v1271, %v1291
    %v1294 = vld [vmem:[#allocation3] sm:$0x8]
    %v1295 = vunpack.c.l.bf16 %v1294
    %v1296 = vpack.c.bf16 %v1293, %v1293
    %v1298 = vrot.slane %v1296, 2
    %1299 = vrot.lane.b32.xlu0 %v1298, 32
    %v1300 = vpop.permute.xlu0 %1299
    %v1302 = vsel %vm160, %v1300, 0
    %1304 = vmatprep.subr.bf16.mxu0 0
    %1305 = vmatpush1.bf16.msra.mxu0 %v1054
    %1306 = vmatprep.subr.bf16.mxu0 0
    %1307 = vmatpush1.bf16.msra.mxu0 %v1055
    %1308 = vmatprep.subr.bf16.mxu0 0
    %1309 = vmatpush1.bf16.msra.mxu0 0
    %1310 = vmatprep.subr.bf16.mxu0 0
    %1311 = vmatpush1.bf16.msra.mxu0 0
    %1312 = vmatprep.subr.bf16.mxu0 0
    %1313 = vmatpush1.bf16.msra.mxu0 0
    %1314 = vmatprep.subr.bf16.mxu0 0
    %1315 = vmatpush1.bf16.msra.mxu0 0
    %1316 = vmatprep.subr.bf16.mxu0 0
    %1317 = vmatpush1.bf16.msra.mxu0 0
    %1318 = vmatprep.subr.bf16.mxu0 0
    %1319 = vmatpush1.bf16.msra.mxu0 0
    %1320 = vmatprep.subr.bf16.mxu0 0
    %1321 = vmatpush1.bf16.msra.mxu0 0
    %1322 = vmatprep.subr.bf16.mxu0 0
    %1323 = vmatpush1.bf16.msra.mxu0 0
    %1324 = vmatprep.subr.bf16.mxu0 0
    %1325 = vmatpush1.bf16.msra.mxu0 0
    %1326 = vmatprep.subr.bf16.mxu0 0
    %1327 = vmatpush1.bf16.msra.mxu0 0
    %1328 = vmatprep.subr.bf16.mxu0 0
    %1329 = vmatpush1.bf16.msra.mxu0 0
    %1330 = vmatprep.subr.bf16.mxu0 0
    %1331 = vmatpush1.bf16.msra.mxu0 0
    %1332 = vmatprep.subr.bf16.mxu0 0
    %1333 = vmatpush1.bf16.msra.mxu0 0
    %1334 = vmatprep.subr.bf16.mxu0 0
    %1335 = vmatpush1.bf16.msra.mxu0 0
    %1336 = vmatprep.mubr.bf16.mxu0 0
    %1337 = vmatmul.mubr.bf16.gmra.mrb[0].mxu0 %v1302
    %v1338 = vpop.f32.mrb[0].mxu0
    %v1339 = vadd.f32 0.0, %v1338
    %v1340 = vpop.f32.mrb[0].mxu0
    %v1341 = vpop.f32.mrb[0].mxu0
    %v1342 = vpop.f32.mrb[0].mxu0
    %1343 = vdwg.mxu0
    %v1345 = vrot.slane %v1339, 2
    %v1347 = vadd.f32 %v1295, %v1345
    %v1348 = vxor.u32 %v1347, 2147483648
    %v1349 = vmul.f32 %v1348, 1.442695
    %v1350 = vpow.pop %v1349
    %v1351 = vadd.f32 %v1350, 1.0
    %v1352 = vrcp.pop %v1351
    %v1353 = vmul.f32 1.0, %v1352
    %v1354 = vmul.f32 %v1353, 2.0
    %v1355 = vsub.f32 %v1354, 1.0
    %v1357 = vrot.slane %v1287, 6
    %v1359 = vmul.f32 %v1353, %v1357
    %1361 = vrot.lane.b32.xlu0 %v1355, 64
    %v1362 = vpop.permute.xlu0 %1361
    %v1364 = vmul.f32 %v1353, %v1362
    %1366 = vrot.lane.b32.xlu0 %v1364, 32
    %v1367 = vpop.permute.xlu0 %1366
    %v1369 = vadd.f32 %v1359, %v1367
    %v1370 = vtanh.pop %v1369
    %1372 = vrot.lane.b32.xlu0 %v1370, 64
    %v1373 = vpop.permute.xlu0 %1372
    %v1375 = vmul.f32 %v1353, %v1373
    %v1376 = vld [vmem:[#allocation3] sm:$0x10]
    %v1378 = vrot.slane %v1376, 4
    %v1380 = vunpack.c.l.bf16 %v1378
    %v1381 = vpack.c.bf16 %v1375, %v1375
    %v1383 = vrot.slane %v1381, 3
    %1384 = vrot.lane.b32.xlu0 %v1383, 32
    %v1385 = vpop.permute.xlu0 %1384
    %v1387 = vsel %vm160, %v1385, 0
    %1389 = vmatprep.subr.bf16.mxu0 0
    %1390 = vmatpush1.bf16.msra.mxu0 %v1054
    %1391 = vmatprep.subr.bf16.mxu0 0
    %1392 = vmatpush1.bf16.msra.mxu0 %v1055
    %1393 = vmatprep.subr.bf16.mxu0 0
    %1394 = vmatpush1.bf16.msra.mxu0 0
    %1395 = vmatprep.subr.bf16.mxu0 0
    %1396 = vmatpush1.bf16.msra.mxu0 0
    %1397 = vmatprep.subr.bf16.mxu0 0
    %1398 = vmatpush1.bf16.msra.mxu0 0
    %1399 = vmatprep.subr.bf16.mxu0 0
    %1400 = vmatpush1.bf16.msra.mxu0 0
    %1401 = vmatprep.subr.bf16.mxu0 0
    %1402 = vmatpush1.bf16.msra.mxu0 0
    %1403 = vmatprep.subr.bf16.mxu0 0
    %1404 = vmatpush1.bf16.msra.mxu0 0
    %1405 = vmatprep.subr.bf16.mxu0 0
    %1406 = vmatpush1.bf16.msra.mxu0 0
    %1407 = vmatprep.subr.bf16.mxu0 0
    %1408 = vmatpush1.bf16.msra.mxu0 0
    %1409 = vmatprep.subr.bf16.mxu0 0
    %1410 = vmatpush1.bf16.msra.mxu0 0
    %1411 = vmatprep.subr.bf16.mxu0 0
    %1412 = vmatpush1.bf16.msra.mxu0 0
    %1413 = vmatprep.subr.bf16.mxu0 0
    %1414 = vmatpush1.bf16.msra.mxu0 0
    %1415 = vmatprep.subr.bf16.mxu0 0
    %1416 = vmatpush1.bf16.msra.mxu0 0
    %1417 = vmatprep.subr.bf16.mxu0 0
    %1418 = vmatpush1.bf16.msra.mxu0 0
    %1419 = vmatprep.subr.bf16.mxu0 0
    %1420 = vmatpush1.bf16.msra.mxu0 0
    %1421 = vmatprep.mubr.bf16.mxu0 0
    %1422 = vmatmul.mubr.bf16.gmra.mrb[0].mxu0 %v1387
    %v1423 = vpop.f32.mrb[0].mxu0
    %v1424 = vadd.f32 0.0, %v1423
    %v1425 = vpop.f32.mrb[0].mxu0
    %v1426 = vpop.f32.mrb[0].mxu0
    %v1427 = vpop.f32.mrb[0].mxu0
    %1428 = vdwg.mxu0
    %v1429 = vadd.f32 %v1380, %v1424
    %v1430 = vxor.u32 %v1429, 2147483648
    %v1431 = vmul.f32 %v1430, 1.442695
    %v1432 = vpow.pop %v1431
    %v1433 = vadd.f32 %v1432, 1.0
    %v1434 = vrcp.pop %v1433
    %v1435 = vmul.f32 1.0, %v1434
    %v1436 = vmul.f32 %v1435, 2.0
    %v1437 = vsub.f32 %v1436, 1.0
    %v1439 = vrot.slane %v1369, 6
    %v1441 = vmul.f32 %v1435, %v1439
    %1443 = vrot.lane.b32.xlu0 %v1437, 64
    %v1444 = vpop.permute.xlu0 %1443
    %v1446 = vmul.f32 %v1435, %v1444
    %1448 = vrot.lane.b32.xlu0 %v1446, 32
    %v1449 = vpop.permute.xlu0 %1448
    %v1451 = vadd.f32 %v1441, %v1449
    %v1452 = vtanh.pop %v1451
    %1454 = vrot.lane.b32.xlu0 %v1452, 64
    %v1455 = vpop.permute.xlu0 %1454
    %v1457 = vmul.f32 %v1435, %v1455
    %v1458 = vld [vmem:[#allocation3] sm:$0x20]
    %v1460 = vrot.slane %v1458, 4
    %v1462 = vunpack.c.l.bf16 %v1460
    %v1463 = vpack.c.bf16 %v1457, %v1457
    %1465 = vrot.lane.b32.xlu0 %v1463, 32
    %v1466 = vpop.permute.xlu0 %1465
    %v1468 = vsel %vm160, %v1466, 0
    %1470 = vmatprep.subr.bf16.mxu0 0
    %1471 = vmatpush1.bf16.msra.mxu0 %v1054
    %1472 = vmatprep.subr.bf16.mxu0 0
    %1473 = vmatpush1.bf16.msra.mxu0 %v1055
    %1474 = vmatprep.subr.bf16.mxu0 0
    %1475 = vmatpush1.bf16.msra.mxu0 0
    %1476 = vmatprep.subr.bf16.mxu0 0
    %1477 = vmatpush1.bf16.msra.mxu0 0
    %1478 = vmatprep.subr.bf16.mxu0 0
    %1479 = vmatpush1.bf16.msra.mxu0 0
    %1480 = vmatprep.subr.bf16.mxu0 0
    %1481 = vmatpush1.bf16.msra.mxu0 0
    %1482 = vmatprep.subr.bf16.mxu0 0
    %1483 = vmatpush1.bf16.msra.mxu0 0
    %1484 = vmatprep.subr.bf16.mxu0 0
    %1485 = vmatpush1.bf16.msra.mxu0 0
    %1486 = vmatprep.subr.bf16.mxu0 0
    %1487 = vmatpush1.bf16.msra.mxu0 0
    %1488 = vmatprep.subr.bf16.mxu0 0
    %1489 = vmatpush1.bf16.msra.mxu0 0
    %1490 = vmatprep.subr.bf16.mxu0 0
    %1491 = vmatpush1.bf16.msra.mxu0 0
    %1492 = vmatprep.subr.bf16.mxu0 0
    %1493 = vmatpush1.bf16.msra.mxu0 0
    %1494 = vmatprep.subr.bf16.mxu0 0
    %1495 = vmatpush1.bf16.msra.mxu0 0
    %1496 = vmatprep.subr.bf16.mxu0 0
    %1497 = vmatpush1.bf16.msra.mxu0 0
    %1498 = vmatprep.subr.bf16.mxu0 0
    %1499 = vmatpush1.bf16.msra.mxu0 0
    %1500 = vmatprep.subr.bf16.mxu0 0
    %1501 = vmatpush1.bf16.msra.mxu0 0
    %1502 = vmatprep.mubr.bf16.mxu0 0
    %1503 = vmatmul.mubr.bf16.gmra.mrb[0].mxu0 %v1468
    %v1504 = vpop.f32.mrb[0].mxu0
    %v1505 = vadd.f32 0.0, %v1504
    %v1506 = vpop.f32.mrb[0].mxu0
    %v1507 = vpop.f32.mrb[0].mxu0
    %v1508 = vpop.f32.mrb[0].mxu0
    %1509 = vdwg.mxu0
    %v1511 = vrot.slane %v1505, 6
    %v1513 = vadd.f32 %v1462, %v1511
    %v1514 = vxor.u32 %v1513, 2147483648
    %v1515 = vmul.f32 %v1514, 1.442695
    %v1516 = vpow.pop %v1515
    %v1517 = vadd.f32 %v1516, 1.0
    %v1518 = vrcp.pop %v1517
    %v1519 = vmul.f32 1.0, %v1518
    %v1520 = vmul.f32 %v1519, 2.0
    %v1521 = vsub.f32 %v1520, 1.0
    %v1523 = vrot.slane %v1451, 6
    %v1525 = vmul.f32 %v1519, %v1523
    %1527 = vrot.lane.b32.xlu0 %v1521, 64
    %v1528 = vpop.permute.xlu0 %1527
    %v1530 = vmul.f32 %v1519, %v1528
    %1532 = vrot.lane.b32.xlu0 %v1530, 32
    %v1533 = vpop.permute.xlu0 %1532
    %v1535 = vadd.f32 %v1525, %v1533
    %v1536 = vtanh.pop %v1535
    %1538 = vrot.lane.b32.xlu0 %v1536, 64
    %v1539 = vpop.permute.xlu0 %1538
    %v1541 = vmul.f32 %v1519, %v1539
    %v1542 = vld [vmem:[#allocation3] sm:$0x40]
    %v1544 = vrot.slane %v1542, 4
    %v1546 = vunpack.c.l.bf16 %v1544
    %v1547 = vpack.c.bf16 %v1541, %v1541
    %v1549 = vrot.slane %v1547, 1
    %1550 = vrot.lane.b32.xlu0 %v1549, 32
    %v1551 = vpop.permute.xlu0 %1550
    %v1553 = vsel %vm160, %v1551, 0
    %1555 = vmatprep.subr.bf16.mxu0 0
    %1556 = vmatpush1.bf16.msra.mxu0 %v1054
    %1557 = vmatprep.subr.bf16.mxu0 0
    %1558 = vmatpush1.bf16.msra.mxu0 %v1055
    %1559 = vmatprep.subr.bf16.mxu0 0
    %1560 = vmatpush1.bf16.msra.mxu0 0
    %1561 = vmatprep.subr.bf16.mxu0 0
    %1562 = vmatpush1.bf16.msra.mxu0 0
    %1563 = vmatprep.subr.bf16.mxu0 0
    %1564 = vmatpush1.bf16.msra.mxu0 0
    %1565 = vmatprep.subr.bf16.mxu0 0
    %1566 = vmatpush1.bf16.msra.mxu0 0
    %1567 = vmatprep.subr.bf16.mxu0 0
    %1568 = vmatpush1.bf16.msra.mxu0 0
    %1569 = vmatprep.subr.bf16.mxu0 0
    %1570 = vmatpush1.bf16.msra.mxu0 0
    %1571 = vmatprep.subr.bf16.mxu0 0
    %1572 = vmatpush1.bf16.msra.mxu0 0
    %1573 = vmatprep.subr.bf16.mxu0 0
    %1574 = vmatpush1.bf16.msra.mxu0 0
    %1575 = vmatprep.subr.bf16.mxu0 0
    %1576 = vmatpush1.bf16.msra.mxu0 0
    %1577 = vmatprep.subr.bf16.mxu0 0
    %1578 = vmatpush1.bf16.msra.mxu0 0
    %1579 = vmatprep.subr.bf16.mxu0 0
    %1580 = vmatpush1.bf16.msra.mxu0 0
    %1581 = vmatprep.subr.bf16.mxu0 0
    %1582 = vmatpush1.bf16.msra.mxu0 0
    %1583 = vmatprep.subr.bf16.mxu0 0
    %1584 = vmatpush1.bf16.msra.mxu0 0
    %1585 = vmatprep.subr.bf16.mxu0 0
    %1586 = vmatpush1.bf16.msra.mxu0 0
    %1587 = vmatprep.mubr.bf16.mxu0 0
    %1588 = vmatmul.mubr.bf16.gmra.mrb[0].mxu0 %v1553
    %v1589 = vpop.f32.mrb[0].mxu0
    %v1590 = vadd.f32 0.0, %v1589
    %v1591 = vpop.f32.mrb[0].mxu0
    %v1592 = vpop.f32.mrb[0].mxu0
    %v1593 = vpop.f32.mrb[0].mxu0
    %1594 = vdwg.mxu0
    %v1596 = vrot.slane %v1590, 4
    %v1598 = vadd.f32 %v1546, %v1596
    %v1599 = vxor.u32 %v1598, 2147483648
    %v1600 = vmul.f32 %v1599, 1.442695
    %v1601 = vpow.pop %v1600
    %v1602 = vadd.f32 %v1601, 1.0
    %v1603 = vrcp.pop %v1602
    %v1604 = vmul.f32 1.0, %v1603
    %v1605 = vmul.f32 %v1604, 2.0
    %v1606 = vsub.f32 %v1605, 1.0
    %v1608 = vrot.slane %v1535, 6
    %v1610 = vmul.f32 %v1604, %v1608
    %1612 = vrot.lane.b32.xlu0 %v1606, 64
    %v1613 = vpop.permute.xlu0 %1612
    %v1615 = vmul.f32 %v1604, %v1613
    %1617 = vrot.lane.b32.xlu0 %v1615, 32
    %v1618 = vpop.permute.xlu0 %1617
    %v1620 = vadd.f32 %v1610, %v1618
    %v1621 = vtanh.pop %v1620
    %1623 = vrot.lane.b32.xlu0 %v1621, 64
    %v1624 = vpop.permute.xlu0 %1623
    %v1626 = vmul.f32 %v1604, %v1624
    %v1627 = vld [vmem:[#allocation3] sm:$0x80]
    %v1629 = vrot.slane %v1627, 4
    %v1631 = vunpack.c.l.bf16 %v1629
    %v1632 = vpack.c.bf16 %v1626, %v1626
    %v1634 = vrot.slane %v1632, 2
    %1635 = vrot.lane.b32.xlu0 %v1634, 32
    %v1636 = vpop.permute.xlu0 %1635
    %v1638 = vsel %vm160, %v1636, 0
    %1640 = vmatprep.subr.bf16.mxu0 0
    %1641 = vmatpush1.bf16.msra.mxu0 %v1054
    %1642 = vmatprep.subr.bf16.mxu0 0
    %1643 = vmatpush1.bf16.msra.mxu0 %v1055
    %1644 = vmatprep.subr.bf16.mxu0 0
    %1645 = vmatpush1.bf16.msra.mxu0 0
    %1646 = vmatprep.subr.bf16.mxu0 0
    %1647 = vmatpush1.bf16.msra.mxu0 0
    %1648 = vmatprep.subr.bf16.mxu0 0
    %1649 = vmatpush1.bf16.msra.mxu0 0
    %1650 = vmatprep.subr.bf16.mxu0 0
    %1651 = vmatpush1.bf16.msra.mxu0 0
    %1652 = vmatprep.subr.bf16.mxu0 0
    %1653 = vmatpush1.bf16.msra.mxu0 0
    %1654 = vmatprep.subr.bf16.mxu0 0
    %1655 = vmatpush1.bf16.msra.mxu0 0
    %1656 = vmatprep.subr.bf16.mxu0 0
    %1657 = vmatpush1.bf16.msra.mxu0 0
    %1658 = vmatprep.subr.bf16.mxu0 0
    %1659 = vmatpush1.bf16.msra.mxu0 0
    %1660 = vmatprep.subr.bf16.mxu0 0
    %1661 = vmatpush1.bf16.msra.mxu0 0
    %1662 = vmatprep.subr.bf16.mxu0 0
    %1663 = vmatpush1.bf16.msra.mxu0 0
    %1664 = vmatprep.subr.bf16.mxu0 0
    %1665 = vmatpush1.bf16.msra.mxu0 0
    %1666 = vmatprep.subr.bf16.mxu0 0
    %1667 = vmatpush1.bf16.msra.mxu0 0
    %1668 = vmatprep.subr.bf16.mxu0 0
    %1669 = vmatpush1.bf16.msra.mxu0 0
    %1670 = vmatprep.subr.bf16.mxu0 0
    %1671 = vmatpush1.bf16.msra.mxu0 0
    %1672 = vmatprep.mubr.bf16.mxu0 0
    %1673 = vmatmul.mubr.bf16.gmra.mrb[0].mxu0 %v1638
    %v1674 = vpop.f32.mrb[0].mxu0
    %v1675 = vadd.f32 0.0, %v1674
    %v1676 = vpop.f32.mrb[0].mxu0
    %v1677 = vpop.f32.mrb[0].mxu0
    %v1678 = vpop.f32.mrb[0].mxu0
    %1679 = vdwg.mxu0
    %v1681 = vrot.slane %v1675, 2
    %v1683 = vadd.f32 %v1631, %v1681
    %v1684 = vxor.u32 %v1683, 2147483648
    %v1685 = vmul.f32 %v1684, 1.442695
    %v1686 = vpow.pop %v1685
    %v1687 = vadd.f32 %v1686, 1.0
    %v1688 = vrcp.pop %v1687
    %v1689 = vmul.f32 1.0, %v1688
    %v1690 = vmul.f32 %v1689, 2.0
    %v1691 = vsub.f32 %v1690, 1.0
    %v1693 = vrot.slane %v1620, 6
    %v1695 = vmul.f32 %v1689, %v1693
    %1697 = vrot.lane.b32.xlu0 %v1691, 64
    %v1698 = vpop.permute.xlu0 %1697
    %v1700 = vmul.f32 %v1689, %v1698
    %1702 = vrot.lane.b32.xlu0 %v1700, 32
    %v1703 = vpop.permute.xlu0 %1702
    %v1705 = vadd.f32 %v1695, %v1703
    %v1706 = vtanh.pop %v1705
    %1708 = vrot.lane.b32.xlu0 %v1706, 64
    %v1709 = vpop.permute.xlu0 %1708
    %v1711 = vmul.f32 %v1689, %v1709
    %1713 = vrot.lane.b32.xlu0 %v1711, 32
    %v1714 = vpop.permute.xlu0 %1713
    %s1716 = scalar_lea.vmem %s10, 2
    %1717 = vst.msk [vmem:[%s1716 - $0x6] sm:$0xc0] %vm955, %v1714
    %1719 = vrot.lane.b32.xlu0 %v1705, 96
    %v1720 = vpop.permute.xlu0 %1719
    %s1722 = scalar_lea.vmem %s11, 2
    %1723 = vst.msk [vmem:[%s1722 - $0x6] sm:$0xc0] %vm955, %v1720
    %v1724 = vpack.c.bf16 %v1711, %v1711
    %v1725 = vld [vmem:[%s7] sm:$0xf]
    %v1726 = vld [vmem:[%s7 + $0x4] sm:$0xf]
    %v1727 = vld [vmem:[%s7 + $0x8] sm:$0xf]
    %v1728 = vld [vmem:[%s7 + $0xc] sm:$0xf]
    %v1729 = vld [vmem:[%s8] sm:$0x1]
    %v1731 = vlaneseq
    %v1732 = vshrl.u32 %v1731, 7
    %v1733 = vsub.s32 0, %v1732
    %v1734 = vrot.slane %v1729, %v1733
    %v1737 = vrot.slane %v1724, 3
    %1738 = vrot.lane.b32.xlu0 %v1737, 32
    %v1739 = vpop.permute.xlu0 %1738
    %v1744 = vunpack.c.l.b16 %v1725
    %v1745 = vunpack.c.l.b16 %v1726
    %v1746 = vunpack.c.l.b16 %v1727
    %v1747 = vunpack.c.l.b16 %v1728
    %v1748 = vpack.c.b16 %v1745, %v1744
    %v1749 = vpack.c.b16 %v1747, %v1746
    %v1753 = vsel %vm160, %v1739, 0
    %1755 = vmatprep.subr.bf16.mxu0 0
    %1756 = vmatpush1.bf16.msra.mxu0 %v1748
    %1757 = vmatprep.subr.bf16.mxu0 0
    %1758 = vmatpush1.bf16.msra.mxu0 %v1749
    %1759 = vmatprep.subr.bf16.mxu0 0
    %1760 = vmatpush1.bf16.msra.mxu0 0
    %1761 = vmatprep.subr.bf16.mxu0 0
    %1762 = vmatpush1.bf16.msra.mxu0 0
    %1763 = vmatprep.subr.bf16.mxu0 0
    %1764 = vmatpush1.bf16.msra.mxu0 0
    %1765 = vmatprep.subr.bf16.mxu0 0
    %1766 = vmatpush1.bf16.msra.mxu0 0
    %1767 = vmatprep.subr.bf16.mxu0 0
    %1768 = vmatpush1.bf16.msra.mxu0 0
    %1769 = vmatprep.subr.bf16.mxu0 0
    %1770 = vmatpush1.bf16.msra.mxu0 0
    %1771 = vmatprep.subr.bf16.mxu0 0
    %1772 = vmatpush1.bf16.msra.mxu0 0
    %1773 = vmatprep.subr.bf16.mxu0 0
    %1774 = vmatpush1.bf16.msra.mxu0 0
    %1775 = vmatprep.subr.bf16.mxu0 0
    %1776 = vmatpush1.bf16.msra.mxu0 0
    %1777 = vmatprep.subr.bf16.mxu0 0
    %1778 = vmatpush1.bf16.msra.mxu0 0
    %1779 = vmatprep.subr.bf16.mxu0 0
    %1780 = vmatpush1.bf16.msra.mxu0 0
    %1781 = vmatprep.subr.bf16.mxu0 0
    %1782 = vmatpush1.bf16.msra.mxu0 0
    %1783 = vmatprep.subr.bf16.mxu0 0
    %1784 = vmatpush1.bf16.msra.mxu0 0
    %1785 = vmatprep.subr.bf16.mxu0 0
    %1786 = vmatpush1.bf16.msra.mxu0 0
    %1787 = vmatprep.mubr.bf16.mxu0 0
    %1788 = vmatmul.mubr.bf16.gmra.mrb[0].mxu0 %v1753
    %v1789 = vpop.f32.mrb[0].mxu0
    %v1790 = vadd.f32 %v1734, %v1789
    %v1791 = vpop.f32.mrb[0].mxu0
    %v1792 = vpop.f32.mrb[0].mxu0
    %v1793 = vpop.f32.mrb[0].mxu0
    %1794 = vdwg.mxu0
    %1795 = vst [vmem:[#allocation4] sm:$0x3] %v1790
    // Predicated region
    $region38: #{rnn_forward.1} parent=1 // pred_check
      _
    $region39: #{rnn_forward.1} parent=1 // pred_check_branch
      %1797 = sbr.rel (0) target = $region41
    $region40: #{rnn_forward.1} parent=1 // pred_region
      %s1799 = ssub.s32 32, 32
      %1800 = vsyncadd [#allocation5], %s1799
      %s1802 = sshll.u32 [#allocation4], 4
      %s1803 = int_to_ptr.vmem [resolvable:$true] %s1802
      %1805 = dma.vmem_to_hbm [thread:$0]  %s1803, 32, %s9, [#allocation5]
    $region41: #{rnn_forward.1} parent=1 // pred_fallthru
      _
    // Predicated region
    $region42: #{rnn_forward.1} parent=1 // pred_check
      _
    $region43: #{rnn_forward.1} parent=1 // pred_check_branch
      %1807 = sbr.rel (0) target = $region45
    $region44: #{rnn_forward.1} parent=1 // pred_region
      _
    $region45: #{rnn_forward.1} parent=1 // pred_fallthru
      _
    // Predicated region
    $region46: #{rnn_forward.1} parent=1 // pred_check
      _
    $region47: #{rnn_forward.1} parent=1 // pred_check_branch
      %1809 = sbr.rel (0) target = $region49
    $region48: #{rnn_forward.1} parent=1 // pred_region
      _
    $region49: #{rnn_forward.1} parent=1 // pred_fallthru
      _
    // Predicated region
    $region50: #{rnn_forward.1} parent=1 // pred_check
      _
    $region51: #{rnn_forward.1} parent=1 // pred_check_branch
      %1811 = sbr.rel (0) target = $region53
    $region52: #{rnn_forward.1} parent=1 // pred_region
      %1812 = dma.done [#allocation5], 32
    $region53: #{rnn_forward.1} parent=1 // pred_fallthru
      _
    // Predicated region
    $region54: #{rnn_forward.1} parent=1 // pred_check
      _
    $region55: #{rnn_forward.1} parent=1 // pred_check_branch
      %1814 = sbr.rel (0) target = $region57
    $region56: #{rnn_forward.1} parent=1 // pred_region
      _
    $region57: #{rnn_forward.1} parent=1 // pred_fallthru
      _
    // Predicated region
    $region58: #{rnn_forward.1} parent=1 // pred_check
      _
    $region59: #{rnn_forward.1} parent=1 // pred_check_branch
      %1816 = sbr.rel (0) target = $region61
    $region60: #{rnn_forward.1} parent=1 // pred_region
      _
    $region61: #{rnn_forward.1} parent=1 // pred_fallthru
      _
    %1817 = vsyncpa [#allocation5], 1

</llo_original>
